<compile_context>
chip_gen: v7x
topology: tpu7x:2x2x1
jax: 0.10.0
libtpu: 0.0.40
codegen_flags: <defaults>
</compile_context>

<pallas_src>
import functools

import jax
import jax.numpy as jnp
from jax import lax
from jax.experimental import pallas as pl
from jax.experimental.pallas import tpu as pltpu


def _round_up_128(c):
    return ((c + 127) // 128) * 128


def _pad_last(a, target):
    pad = target - a.shape[-1]
    if pad == 0:
        return a
    widths = [(0, 0)] * (a.ndim - 1) + [(0, pad)]
    return jnp.pad(a, widths)


def _vmem_limit_bytes():
    # ~3/4 of physical VMEM: ~48 MiB on v7x (64 MiB phys), 96 MiB on v5e/v6e.
    try:
        cap = int(pltpu.get_tpu_info().vmem_capacity_bytes)
        return min(96 * 1024 * 1024, (cap * 3) // 4)
    except Exception:
        return 48 * 1024 * 1024


def _pick_batch_block(n, h, w, target_rows=512):
    """Pack batch elements per grid step so the matmul M dim is >= ~target_rows."""
    want = max(1, min(n, -(-target_rows // (h * w))))
    while n % want:
        want -= 1
    return want


def _res_block_kernel(x_ref, w1_ref, b1_ref, w2_ref, b2_ref,
                      w3_ref, b3_ref, o_ref, *, dims):
    # x_ref / o_ref blocks: (B*H*W, Cp) bf16, channels zero-padded to 128-multiple.
    B, H, W = dims
    M, Cp = x_ref.shape
    Cm = w1_ref.shape[1]
    BH, HW = B * H, H * W
    f32 = jnp.float32

    # ---- conv1 (1x1) + folded BN1 + ReLU: one channel matmul on the MXU -------
    y1 = jnp.dot(x_ref[...], w1_ref[...], preferred_element_type=f32)
    y1 = jnp.maximum(y1 + b1_ref[...], 0.0)                       # (M, Cm) f32

    # ---- conv2 (3x3, stride 1, pad 1) + folded BN2 + ReLU ----------------------
    # dx (width) taps built ONCE: XLU sublane rolls + tiny (1, W, 1) edge masks.
    y1_3d = y1.reshape(BH, W, Cm)
    col = lax.broadcasted_iota(jnp.int32, (1, W, 1), 1)
    not_first = (col > 0).astype(f32)                             # 0 at w == 0
    not_last = (col < W - 1).astype(f32)                          # 0 at w == W-1
    xm1 = pltpu.roll(y1_3d, 1, axis=1) * not_first                # y1[., w-1]
    xp1 = pltpu.roll(y1_3d, W - 1, axis=1) * not_last             # y1[., w+1]
    xcat = jnp.concatenate(
        [xm1.reshape(M, Cm).astype(jnp.bfloat16),
         y1.astype(jnp.bfloat16),
         xp1.reshape(M, Cm).astype(jnp.bfloat16)], axis=-1)       # (M, 3*Cm) bf16

    # One matmul per ky (K = 3*Cm).  The dy (height) shift commutes with the
    # matmul, so it is applied to the f32 partial outputs (no per-ky concats).
    p = [jnp.dot(xcat, w2_ref[ky], preferred_element_type=f32).reshape(B, HW, Cm)
         for ky in range(3)]
    zrow = jnp.zeros((B, W, Cm), f32)
    acc = (jnp.concatenate([zrow, p[0][:, :HW - W]], axis=1)      # P0[b, h-1, w]
           + p[1]
           + jnp.concatenate([p[2][:, W:], zrow], axis=1))        # P2[b, h+1, w]
    y2 = jnp.maximum(acc.reshape(M, Cm) + b2_ref[...], 0.0).astype(jnp.bfloat16)

    # ---- conv3 (1x1) + folded BN3 ----------------------------------------------
    y3 = jnp.dot(y2, w3_ref[...], preferred_element_type=f32) + b3_ref[...]

    # ---- residual add (identity_downsample is None) in f32 + ReLU, bf16 store --
    out = jnp.maximum(y3 + x_ref[...].astype(f32), 0.0)
    o_ref[...] = out.astype(o_ref.dtype)


def _fold_bn(conv_bias, gamma, beta, mean, var, eps=1e-5):
    """Fold conv bias + inference BatchNorm into per-channel scale/bias."""
    scale = gamma / jnp.sqrt(var + eps)
    bias = (conv_bias - mean) * scale + beta
    return scale[None, :], bias[None, :]                          # shape (1, C)


def pack_res_block_params(params):
    """Fold BN scales into the weights, zero-pad channels to 128-multiples and
    cast weights to bf16.  Call ONCE and reuse — keeps packing off the per-call
    (hot) path."""
    w1, w2, w3 = params["w1"], params["w2"], params["w3"]
    Cin, Cmid = w1.shape
    Cout = w3.shape[1]
    Cin_p, Cm_p, Cout_p = (_round_up_128(c) for c in (Cin, Cmid, Cout))

    # Fold BN scale into weight output-channels in f32, cast to bf16 afterwards.
    w1f = w1 * params["s1"]                                       # (Cin, Cmid)
    w2f = w2 * params["s2"].reshape(1, 1, 1, Cmid)                # (3,3,Cmid,Cmid)
    w3f = w3 * params["s3"]                                       # (Cmid, Cout)

    w1p = jnp.zeros((Cin_p, Cm_p), jnp.float32).at[:Cin, :Cmid].set(w1f)
    w3p = jnp.zeros((Cm_p, Cout_p), jnp.float32).at[:Cmid, :Cout].set(w3f)
    # 3x3 weights packed as (ky, kx * Cm_p + ci, co): the three kx taps fold into
    # the matmul contraction (K) dimension.
    w2p = jnp.zeros((3, 3 * Cm_p, Cm_p), jnp.float32)
    for ky in range(3):
        for kx in range(3):
            w2p = w2p.at[ky, kx * Cm_p:kx * Cm_p + Cmid, :Cmid].set(w2f[ky, kx])

    packed = {
        "w1": w1p.astype(jnp.bfloat16), "b1": _pad_last(params["b1"], Cm_p),
        "w2": w2p.astype(jnp.bfloat16), "b2": _pad_last(params["b2"], Cm_p),
        "w3": w3p.astype(jnp.bfloat16), "b3": _pad_last(params["b3"], Cout_p),
    }
    dims = {"Cin": Cin, "Cmid": Cmid, "Cout": Cout}
    return packed, dims


def res_block_pallas(x_nhwc, packed, dims, *, batch_block=None):
    N, H, W, Cin = x_nhwc.shape
    Cout = dims["Cout"]
    assert Cin == dims["Cin"] and Cin == Cout, \
        "residual add requires in_chan == out_chan * 4 (identity_downsample=None)"

    Cin_p = packed["w1"].shape[0]
    Cout_p = packed["w3"].shape[1]

    if batch_block is None:
        batch_block = _pick_batch_block(N, H, W)
    assert N % batch_block == 0
    grid_n = N // batch_block
    rows = batch_block * H * W

    # bf16, lane-dense (128-padded channels) HBM I/O presented as a 2-D
    # (rows, channels) slab: halves HBM traffic on a memory-bound kernel and
    # makes every output store an unmasked lane-dense vst.
    x2 = _pad_last(x_nhwc, Cin_p).astype(jnp.bfloat16).reshape(N * H * W, Cin_p)

    full = lambda a: pl.BlockSpec(a.shape, lambda n: (0,) * a.ndim)
    kernel = functools.partial(_res_block_kernel, dims=(batch_block, H, W))

    # NOTE: for very large feature maps an extra H-tile grid axis with a 1-row
    # halo (and single-buffered weight blocks) would trim per-step live VMEM;
    # at ResNet block sizes the working set already fits comfortably.
    out2 = pl.pallas_call(
        kernel,
        out_shape=jax.ShapeDtypeStruct((N * H * W, Cout_p), jnp.bfloat16),
        grid_spec=pltpu.PrefetchScalarGridSpec(
            num_scalar_prefetch=0,
            grid=(grid_n,),
            in_specs=[
                pl.BlockSpec((rows, Cin_p), lambda n: (n, 0)),
                full(packed["w1"]), full(packed["b1"]),
                full(packed["w2"]), full(packed["b2"]),
                full(packed["w3"]), full(packed["b3"]),
            ],
            out_specs=pl.BlockSpec((rows, Cout_p), lambda n: (n, 0)),
        ),
        compiler_params=pltpu.CompilerParams(
            dimension_semantics=("parallel",),      # shards batch blocks on v7x TCs
            vmem_limit_bytes=_vmem_limit_bytes()),
    )(x2, packed["w1"], packed["b1"], packed["w2"], packed["b2"],
      packed["w3"], packed["b3"])

    return out2.reshape(N, H, W, Cout_p)[..., :Cout]              # drop channel pad


def make_params(key, in_chan, out_chan):
    """Deterministic synthetic parameters matching the module's shapes."""
    exp = 4
    ks = jax.random.split(key, 18)
    f32 = jnp.float32

    def conv_w(k, shape):
        return jax.random.normal(k, shape, f32) * 0.1

    # conv1: 1x1, in_chan -> out_chan  (stored as (Cin, Cout) matmul weight)
    w1 = conv_w(ks[0], (in_chan, out_chan))
    cb1 = jax.random.normal(ks[1], (out_chan,), f32) * 0.01
    # conv2: 3x3, out_chan -> out_chan (stored as (3, 3, Cin, Cout) = HWIO)
    w2 = conv_w(ks[2], (3, 3, out_chan, out_chan))
    cb2 = jax.random.normal(ks[3], (out_chan,), f32) * 0.01
    # conv3: 1x1, out_chan -> out_chan * 4
    w3 = conv_w(ks[4], (out_chan, out_chan * exp))
    cb3 = jax.random.normal(ks[5], (out_chan * exp,), f32) * 0.01

    def bn(kw, kb, km, kv, c):
        gamma = 1.0 + 0.1 * jax.random.normal(kw, (c,), f32)
        beta = 0.1 * jax.random.normal(kb, (c,), f32)
        mean = 0.1 * jax.random.normal(km, (c,), f32)
        var = jnp.abs(jax.random.normal(kv, (c,), f32)) + 0.5
        return gamma, beta, mean, var

    g1, be1, m1, v1 = bn(ks[6], ks[7], ks[8], ks[9], out_chan)
    g2, be2, m2, v2 = bn(ks[10], ks[11], ks[12], ks[13], out_chan)
    g3, be3, m3, v3 = bn(ks[14], ks[15], ks[16], ks[17], out_chan * exp)

    s1, b1 = _fold_bn(cb1, g1, be1, m1, v1)
    s2, b2 = _fold_bn(cb2, g2, be2, m2, v2)
    s3, b3 = _fold_bn(cb3, g3, be3, m3, v3)

    return {"w1": w1, "s1": s1, "b1": b1,
            "w2": w2, "s2": s2, "b2": b2,
            "w3": w3, "s3": s3, "b3": b3}


def res_block_reference(x_nhwc, params):
    """Pure-JAX reference (same bf16-operand / f32-accumulate math)."""
    dn = ("NHWC", "HWIO", "NHWC")
    bf = jnp.bfloat16

    def conv(x, w, pad):
        return lax.conv_general_dilated(
            x.astype(bf), w.astype(bf), (1, 1), pad,
            dimension_numbers=dn, preferred_element_type=jnp.float32)

    y = conv(x_nhwc, params["w1"][None, None], "VALID") * params["s1"] + params["b1"]
    y = jnp.maximum(y, 0.0)
    y = conv(y, params["w2"], ((1, 1), (1, 1))) * params["s2"] + params["b2"]
    y = jnp.maximum(y, 0.0)
    y = conv(y, params["w3"][None, None], "VALID") * params["s3"] + params["b3"]
    return jnp.maximum(y + x_nhwc, 0.0)


if __name__ == "__main__":
    key = jax.random.PRNGKey(0)
    k_x, k_p = jax.random.split(key)

    # small shapes: batch=2, out_chan=8 -> in_chan = out_chan*4 = 32, spatial 8x8
    N, out_chan, H, W = 2, 8, 8, 8
    in_chan = out_chan * 4

    x_nchw = jax.random.normal(k_x, (N, in_chan, H, W), jnp.float32)  # torch layout
    x_nhwc = jnp.transpose(x_nchw, (0, 2, 3, 1))                      # kernel layout

    params = make_params(k_p, in_chan, out_chan)
    packed, dims = pack_res_block_params(params)   # one-time packing (off hot path)

    out = jax.block_until_ready(res_block_pallas(x_nhwc, packed, dims))
    ref = res_block_reference(x_nhwc, params)

    assert out.shape == (N, H, W, in_chan)
    assert jnp.allclose(out.astype(jnp.float32), ref, atol=2e-2, rtol=2e-2), \
        "mismatch vs reference"

    print("KERNEL_OK")
</pallas_src>

<mosaic_0001>
module attributes {stable_mosaic.version = 11 : i64} {
  func.func @_res_block_kernel(%arg0: i32, %arg1: memref<128x128xbf16, #tpu.memory_space<vmem>>, %arg2: memref<128x128xbf16, #tpu.memory_space<vmem>>, %arg3: memref<1x128xf32, #tpu.memory_space<vmem>>, %arg4: memref<3x384x128xbf16, #tpu.memory_space<vmem>>, %arg5: memref<1x128xf32, #tpu.memory_space<vmem>>, %arg6: memref<128x128xbf16, #tpu.memory_space<vmem>>, %arg7: memref<1x128xf32, #tpu.memory_space<vmem>>, %arg8: memref<128x128xbf16, #tpu.memory_space<vmem>>) attributes {dimension_semantics = [#tpu.dimension_semantics<parallel>], iteration_bounds = array<i64: 1>, scalar_prefetch = 0 : i64, scratch_operands = 0 : i64, tpu.core_type = #tpu.core_type<tc>, window_params = [{transform_indices = @transform_0, window_bounds = array<i64: 128, 128>}, {pipeline_mode = #tpu.pipeline_mode<synchronous>, transform_indices = @transform_1, window_bounds = array<i64: 128, 128>}, {pipeline_mode = #tpu.pipeline_mode<synchronous>, transform_indices = @transform_2, window_bounds = array<i64: 1, 128>}, {pipeline_mode = #tpu.pipeline_mode<synchronous>, transform_indices = @transform_3, window_bounds = array<i64: 3, 384, 128>}, {pipeline_mode = #tpu.pipeline_mode<synchronous>, transform_indices = @transform_4, window_bounds = array<i64: 1, 128>}, {pipeline_mode = #tpu.pipeline_mode<synchronous>, transform_indices = @transform_5, window_bounds = array<i64: 128, 128>}, {pipeline_mode = #tpu.pipeline_mode<synchronous>, transform_indices = @transform_6, window_bounds = array<i64: 1, 128>}, {transform_indices = @transform_7, window_bounds = array<i64: 128, 128>}]} {
    %c0 = arith.constant 0 : index
    %c0_0 = arith.constant 0 : index
    %0 = vector.load %arg1[%c0, %c0_0] : memref<128x128xbf16, #tpu.memory_space<vmem>>, vector<128x128xbf16>
    %c0_1 = arith.constant 0 : index
    %c0_2 = arith.constant 0 : index
    %1 = vector.load %arg2[%c0_1, %c0_2] : memref<128x128xbf16, #tpu.memory_space<vmem>>, vector<128x128xbf16>
    %cst = arith.constant dense<0.000000e+00> : vector<128x128xf32>
    %2 = tpu.matmul %0, %1, %cst {dimension_numbers = #tpu.dot_dimension_numbers<[1], [0], [0], [1], [0, 0, 1, 1], [], []>} : vector<128x128xbf16>, vector<128x128xbf16>, vector<128x128xf32> -> vector<128x128xf32>
    %c0_3 = arith.constant 0 : index
    %c0_4 = arith.constant 0 : index
    %3 = vector.load %arg3[%c0_3, %c0_4] : memref<1x128xf32, #tpu.memory_space<vmem>>, vector<1x128xf32>
    %4 = vector.broadcast %3 : vector<1x128xf32> to vector<128x128xf32>
    %5 = arith.addf %2, %4 : vector<128x128xf32>
    %cst_5 = arith.constant 0.000000e+00 : f32
    %6 = vector.broadcast %cst_5 : f32 to vector<128x128xf32>
    %7 = arith.maximumf %5, %6 : vector<128x128xf32>
    %8 = vector.shape_cast %7 : vector<128x128xf32> to vector<16x8x128xf32>
    %9 = tpu.iota {dimensions = array<i32: 1>} : vector<1x8x1xi32>
    %c0_i32 = arith.constant 0 : i32
    %10 = vector.broadcast %c0_i32 : i32 to vector<1x8x1xi32>
    %11 = arith.cmpi sgt, %9, %10 : vector<1x8x1xi32>
    %12 = arith.extui %11 : vector<1x8x1xi1> to vector<1x8x1xi32>
    %13 = arith.sitofp %12 : vector<1x8x1xi32> to vector<1x8x1xf32>
    %c7_i32 = arith.constant 7 : i32
    %14 = vector.broadcast %c7_i32 : i32 to vector<1x8x1xi32>
    %15 = arith.cmpi slt, %9, %14 : vector<1x8x1xi32>
    %16 = arith.extui %15 : vector<1x8x1xi1> to vector<1x8x1xi32>
    %17 = arith.sitofp %16 : vector<1x8x1xi32> to vector<1x8x1xf32>
    %c1_i32 = arith.constant 1 : i32
    %18 = tpu.dynamic_rotate %8 by %c1_i32 dim 1 : vector<16x8x128xf32>, i32 -> vector<16x8x128xf32>
    %19 = vector.broadcast %13 : vector<1x8x1xf32> to vector<16x8x128xf32>
    %20 = arith.mulf %18, %19 : vector<16x8x128xf32>
    %c7_i32_6 = arith.constant 7 : i32
    %21 = tpu.dynamic_rotate %8 by %c7_i32_6 dim 1 : vector<16x8x128xf32>, i32 -> vector<16x8x128xf32>
    %22 = vector.broadcast %17 : vector<1x8x1xf32> to vector<16x8x128xf32>
    %23 = arith.mulf %21, %22 : vector<16x8x128xf32>
    %24 = vector.shape_cast %20 : vector<16x8x128xf32> to vector<128x128xf32>
    %25 = arith.truncf %24 : vector<128x128xf32> to vector<128x128xbf16>
    %26 = arith.truncf %7 : vector<128x128xf32> to vector<128x128xbf16>
    %27 = vector.shape_cast %23 : vector<16x8x128xf32> to vector<128x128xf32>
    %28 = arith.truncf %27 : vector<128x128xf32> to vector<128x128xbf16>
    %29 = tpu.concatenate %25, %26, %28 in 1 : vector<128x128xbf16>, vector<128x128xbf16>, vector<128x128xbf16> -> vector<128x384xbf16>
    %c0_7 = arith.constant 0 : index
    %c0_8 = arith.constant 0 : index
    %c0_9 = arith.constant 0 : index
    %30 = vector.load %arg4[%c0_7, %c0_8, %c0_9] : memref<3x384x128xbf16, #tpu.memory_space<vmem>>, vector<1x384x128xbf16>
    %31 = vector.shape_cast %30 : vector<1x384x128xbf16> to vector<384x128xbf16>
    %cst_10 = arith.constant dense<0.000000e+00> : vector<128x128xf32>
    %32 = tpu.matmul %29, %31, %cst_10 {dimension_numbers = #tpu.dot_dimension_numbers<[1], [0], [0], [1], [0, 0, 1, 1], [], []>} : vector<128x384xbf16>, vector<384x128xbf16>, vector<128x128xf32> -> vector<128x128xf32>
    %33 = vector.shape_cast %32 : vector<128x128xf32> to vector<2x64x128xf32>
    %c1 = arith.constant 1 : index
    %c0_11 = arith.constant 0 : index
    %c0_12 = arith.constant 0 : index
    %34 = vector.load %arg4[%c1, %c0_11, %c0_12] : memref<3x384x128xbf16, #tpu.memory_space<vmem>>, vector<1x384x128xbf16>
    %35 = vector.shape_cast %34 : vector<1x384x128xbf16> to vector<384x128xbf16>
    %cst_13 = arith.constant dense<0.000000e+00> : vector<128x128xf32>
    %36 = tpu.matmul %29, %35, %cst_13 {dimension_numbers = #tpu.dot_dimension_numbers<[1], [0], [0], [1], [0, 0, 1, 1], [], []>} : vector<128x384xbf16>, vector<384x128xbf16>, vector<128x128xf32> -> vector<128x128xf32>
    %37 = vector.shape_cast %36 : vector<128x128xf32> to vector<2x64x128xf32>
    %c2 = arith.constant 2 : index
    %c0_14 = arith.constant 0 : index
    %c0_15 = arith.constant 0 : index
    %38 = vector.load %arg4[%c2, %c0_14, %c0_15] : memref<3x384x128xbf16, #tpu.memory_space<vmem>>, vector<1x384x128xbf16>
    %39 = vector.shape_cast %38 : vector<1x384x128xbf16> to vector<384x128xbf16>
    %cst_16 = arith.constant dense<0.000000e+00> : vector<128x128xf32>
    %40 = tpu.matmul %29, %39, %cst_16 {dimension_numbers = #tpu.dot_dimension_numbers<[1], [0], [0], [1], [0, 0, 1, 1], [], []>} : vector<128x384xbf16>, vector<384x128xbf16>, vector<128x128xf32> -> vector<128x128xf32>
    %41 = vector.shape_cast %40 : vector<128x128xf32> to vector<2x64x128xf32>
    %cst_17 = arith.constant 0.000000e+00 : f32
    %42 = vector.broadcast %cst_17 : f32 to vector<2x8x128xf32>
    %43 = vector.extract_strided_slice %33 {offsets = [0, 0, 0], sizes = [2, 56, 128], strides = [1, 1, 1]} : vector<2x64x128xf32> to vector<2x56x128xf32>
    %44 = tpu.concatenate %42, %43 in 1 : vector<2x8x128xf32>, vector<2x56x128xf32> -> vector<2x64x128xf32>
    %45 = arith.addf %44, %37 : vector<2x64x128xf32>
    %46 = vector.extract_strided_slice %41 {offsets = [0, 8, 0], sizes = [2, 56, 128], strides = [1, 1, 1]} : vector<2x64x128xf32> to vector<2x56x128xf32>
    %47 = tpu.concatenate %46, %42 in 1 : vector<2x56x128xf32>, vector<2x8x128xf32> -> vector<2x64x128xf32>
    %48 = arith.addf %45, %47 : vector<2x64x128xf32>
    %49 = vector.shape_cast %48 : vector<2x64x128xf32> to vector<128x128xf32>
    %c0_18 = arith.constant 0 : index
    %c0_19 = arith.constant 0 : index
    %50 = vector.load %arg5[%c0_18, %c0_19] : memref<1x128xf32, #tpu.memory_space<vmem>>, vector<1x128xf32>
    %51 = vector.broadcast %50 : vector<1x128xf32> to vector<128x128xf32>
    %52 = arith.addf %49, %51 : vector<128x128xf32>
    %cst_20 = arith.constant 0.000000e+00 : f32
    %53 = vector.broadcast %cst_20 : f32 to vector<128x128xf32>
    %54 = arith.maximumf %52, %53 : vector<128x128xf32>
    %55 = arith.truncf %54 : vector<128x128xf32> to vector<128x128xbf16>
    %c0_21 = arith.constant 0 : index
    %c0_22 = arith.constant 0 : index
    %56 = vector.load %arg6[%c0_21, %c0_22] : memref<128x128xbf16, #tpu.memory_space<vmem>>, vector<128x128xbf16>
    %cst_23 = arith.constant dense<0.000000e+00> : vector<128x128xf32>
    %57 = tpu.matmul %55, %56, %cst_23 {dimension_numbers = #tpu.dot_dimension_numbers<[1], [0], [0], [1], [0, 0, 1, 1], [], []>} : vector<128x128xbf16>, vector<128x128xbf16>, vector<128x128xf32> -> vector<128x128xf32>
    %c0_24 = arith.constant 0 : index
    %c0_25 = arith.constant 0 : index
    %58 = vector.load %arg7[%c0_24, %c0_25] : memref<1x128xf32, #tpu.memory_space<vmem>>, vector<1x128xf32>
    %59 = vector.broadcast %58 : vector<1x128xf32> to vector<128x128xf32>
    %60 = arith.addf %57, %59 : vector<128x128xf32>
    %c0_26 = arith.constant 0 : index
    %c0_27 = arith.constant 0 : index
    %61 = vector.load %arg1[%c0_26, %c0_27] : memref<128x128xbf16, #tpu.memory_space<vmem>>, vector<128x128xbf16>
    %62 = arith.extf %61 : vector<128x128xbf16> to vector<128x128xf32>
    %63 = arith.addf %60, %62 : vector<128x128xf32>
    %cst_28 = arith.constant 0.000000e+00 : f32
    %64 = vector.broadcast %cst_28 : f32 to vector<128x128xf32>
    %65 = arith.maximumf %63, %64 : vector<128x128xf32>
    %66 = arith.truncf %65 : vector<128x128xf32> to vector<128x128xbf16>
    %c0_29 = arith.constant 0 : index
    %c0_30 = arith.constant 0 : index
    %67 = vector.load %arg8[%c0_29, %c0_30] : memref<128x128xbf16, #tpu.memory_space<vmem>>, vector<128x128xbf16>
    tpu.vector_store %arg8[%c0_29, %c0_30], %66 {strides = array<i32>} : memref<128x128xbf16, #tpu.memory_space<vmem>>, vector<128x128xbf16>,
    return
  }
  func.func @transform_0(%arg0: i32) -> (i32, i32) {
    %c0_i32 = arith.constant 0 : i32
    %c0_i32_0 = arith.constant 0 : i32
    return %arg0, %c0_i32 : i32, i32
  }
  func.func @transform_1(%arg0: i32) -> (i32, i32) {
    %c0_i32 = arith.constant 0 : i32
    %c0_i32_0 = arith.constant 0 : i32
    %c0_i32_1 = arith.constant 0 : i32
    return %c0_i32, %c0_i32_0 : i32, i32
  }
  func.func @transform_2(%arg0: i32) -> (i32, i32) {
    %c0_i32 = arith.constant 0 : i32
    %c0_i32_0 = arith.constant 0 : i32
    %c0_i32_1 = arith.constant 0 : i32
    return %c0_i32, %c0_i32_0 : i32, i32
  }
  func.func @transform_3(%arg0: i32) -> (i32, i32, i32) {
    %c0_i32 = arith.constant 0 : i32
    %c0_i32_0 = arith.constant 0 : i32
    %c0_i32_1 = arith.constant 0 : i32
    %c0_i32_2 = arith.constant 0 : i32
    return %c0_i32, %c0_i32_0, %c0_i32_1 : i32, i32, i32
  }
  func.func @transform_4(%arg0: i32) -> (i32, i32) {
    %c0_i32 = arith.constant 0 : i32
    %c0_i32_0 = arith.constant 0 : i32
    %c0_i32_1 = arith.constant 0 : i32
    return %c0_i32, %c0_i32_0 : i32, i32
  }
  func.func @transform_5(%arg0: i32) -> (i32, i32) {
    %c0_i32 = arith.constant 0 : i32
    %c0_i32_0 = arith.constant 0 : i32
    %c0_i32_1 = arith.constant 0 : i32
    return %c0_i32, %c0_i32_0 : i32, i32
  }
  func.func @transform_6(%arg0: i32) -> (i32, i32) {
    %c0_i32 = arith.constant 0 : i32
    %c0_i32_0 = arith.constant 0 : i32
    %c0_i32_1 = arith.constant 0 : i32
    return %c0_i32, %c0_i32_0 : i32, i32
  }
  func.func @transform_7(%arg0: i32) -> (i32, i32) {
    %c0_i32 = arith.constant 0 : i32
    %c0_i32_0 = arith.constant 0 : i32
    return %arg0, %c0_i32 : i32, i32
  }
}

</mosaic_0001>

<llo_original>
// kernel: tpu_custom_call.1
$region0: #{tpu_custom_call.1}
  #allocation0 [shape = 'u32[]', space=smem, size = 0x4, offset = 0x4, fixed_abs, tag = 'smem constant byte address 0x4 - core index']
  #allocation1 [shape = 'u32[144,128]{1,0:T(1,128)}', space=vmem, size = 0x12000, scoped, tag = 'internal scratch']
  %s0 = inlined_call_operand.hbm [shape: bf16[128,128], index: 0, kind: input, shape index: {}]
  %s1 = inlined_call_operand.hbm [shape: bf16[128,128], index: 1, kind: input, shape index: {}]
  %s2 = inlined_call_operand.vmem [shape: f32[1,128], index: 2, kind: input, shape index: {}]
  %s3 = inlined_call_operand.hbm [shape: bf16[3,384,128], index: 3, kind: input, shape index: {}]
  %s4 = inlined_call_operand.vmem [shape: f32[1,128], index: 4, kind: input, shape index: {}]
  %s5 = inlined_call_operand.hbm [shape: bf16[128,128], index: 5, kind: input, shape index: {}]
  %s6 = inlined_call_operand.vmem [shape: f32[1,128], index: 6, kind: input, shape index: {}]
  %s7 = inlined_call_operand.hbm [shape: bf16[128,128], index: 7, kind: output, shape index: {}]
  %s8 = sld [smem:[#allocation0]]
  $region54: #{tpu_custom_call.1} parent=0
    _
  %s10 = ssub.s32 1, %s8
  %s11 = scalar_select 0, %s10, %s8
  $region1: #{tpu_custom_call.1} parent=0
    #allocation2 [shape = 'u8[32768]{0}', space=vmem, size = 0x8000, scoped, tag = 'input window, operand 0, single buffered']
    #allocation3 [shape = 's32[1]{0}', space=sflag, size = 0x4, scoped, tag = 'scoped memory for tpu_custom_call.1']
    #allocation4 [shape = 's32[1]{0}', space=sflag, size = 0x4, scoped, tag = 'scoped memory for tpu_custom_call.1']
    #allocation5 [shape = 'u8[32768]{0}', space=vmem, size = 0x8000, scoped, tag = 'input window, operand 1, single buffered']
    #allocation6 [shape = 's32[1]{0}', space=sflag, size = 0x4, scoped, tag = 'scoped memory for tpu_custom_call.1']
    #allocation7 [shape = 'u8[294912]{0}', space=vmem, size = 0x48000, scoped, tag = 'input window, operand 3, single buffered']
    #allocation8 [shape = 'u8[32768]{0}', space=vmem, size = 0x8000, scoped, tag = 'input window, operand 5, single buffered']
    #allocation9 [shape = 's32[1]{0}', space=sflag, size = 0x4, scoped, tag = 'scoped memory for tpu_custom_call.1']
    #allocation10 [shape = 'u8[32768]{0}', space=vmem, size = 0x8000, scoped, tag = 'output window, operand 0, single buffered']
    %12 = vsyncpa [#allocation3], 0
    %13 = vsyncpa [#allocation6], 0
    %14 = vsyncpa [#allocation9], 0
    %15 = vsyncpa [#allocation4], 0
    // Predicated region
    $region2: #{tpu_custom_call.1} parent=1 // pred_check
      _
    $region3: #{tpu_custom_call.1} parent=1 // pred_check_branch
      %17 = sbr.rel (0) target = $region5
    $region4: #{tpu_custom_call.1} parent=1 // pred_region
      %s19 = ssub.s32 1024, 1024
      %20 = vsyncadd [#allocation3], %s19
      %s21 = sshll.u32 [#allocation2], 4
      %s22 = int_to_ptr.vmem [resolvable:$true] %s21
      %27 = dma.hbm_to_vmem [thread:$0]  %s0, 1024, %s22, [#allocation3], 64, 64, 4
    $region5: #{tpu_custom_call.1} parent=1 // pred_fallthru
      _
    // Predicated region
    $region6: #{tpu_custom_call.1} parent=1 // pred_check
      _
    $region7: #{tpu_custom_call.1} parent=1 // pred_check_branch
      %29 = sbr.rel (0) target = $region9
    $region8: #{tpu_custom_call.1} parent=1 // pred_region
      %s31 = ssub.s32 1024, 1024
      %32 = vsyncadd [#allocation6], %s31
      %s33 = sshll.u32 [#allocation5], 4
      %s34 = int_to_ptr.vmem [resolvable:$true] %s33
      %39 = dma.hbm_to_vmem [thread:$0]  %s1, 1024, %s34, [#allocation6], 64, 64, 4
    $region9: #{tpu_custom_call.1} parent=1 // pred_fallthru
      _
    // Predicated region
    $region10: #{tpu_custom_call.1} parent=1 // pred_check
      _
    $region11: #{tpu_custom_call.1} parent=1 // pred_check_branch
      %41 = sbr.rel (0) target = $region13
    $region12: #{tpu_custom_call.1} parent=1 // pred_region
      _
    $region13: #{tpu_custom_call.1} parent=1 // pred_fallthru
      _
    // Predicated region
    $region14: #{tpu_custom_call.1} parent=1 // pred_check
      _
    $region15: #{tpu_custom_call.1} parent=1 // pred_check_branch
      %43 = sbr.rel (0) target = $region17
    $region16: #{tpu_custom_call.1} parent=1 // pred_region
      %s45 = ssub.s32 9216, 9216
      %46 = vsyncadd [#allocation6], %s45
      %s47 = sshll.u32 [#allocation7], 4
      %s48 = int_to_ptr.vmem [resolvable:$true] %s47
      %53 = dma.hbm_to_vmem [thread:$0]  %s3, 9216, %s48, [#allocation6], 64, 64, 4
    $region17: #{tpu_custom_call.1} parent=1 // pred_fallthru
      _
    // Predicated region
    $region18: #{tpu_custom_call.1} parent=1 // pred_check
      _
    $region19: #{tpu_custom_call.1} parent=1 // pred_check_branch
      %55 = sbr.rel (0) target = $region21
    $region20: #{tpu_custom_call.1} parent=1 // pred_region
      _
    $region21: #{tpu_custom_call.1} parent=1 // pred_fallthru
      _
    // Predicated region
    $region22: #{tpu_custom_call.1} parent=1 // pred_check
      _
    $region23: #{tpu_custom_call.1} parent=1 // pred_check_branch
      %57 = sbr.rel (0) target = $region25
    $region24: #{tpu_custom_call.1} parent=1 // pred_region
      %s59 = ssub.s32 1024, 1024
      %60 = vsyncadd [#allocation9], %s59
      %s61 = sshll.u32 [#allocation8], 4
      %s62 = int_to_ptr.vmem [resolvable:$true] %s61
      %67 = dma.hbm_to_vmem [thread:$0]  %s5, 1024, %s62, [#allocation9], 64, 64, 4
    $region25: #{tpu_custom_call.1} parent=1 // pred_fallthru
      _
    // Predicated region
    $region26: #{tpu_custom_call.1} parent=1 // pred_check
      _
    $region27: #{tpu_custom_call.1} parent=1 // pred_check_branch
      %69 = sbr.rel (0) target = $region29
    $region28: #{tpu_custom_call.1} parent=1 // pred_region
      _
    $region29: #{tpu_custom_call.1} parent=1 // pred_fallthru
      _
    // Predicated region
    $region30: #{tpu_custom_call.1} parent=1 // pred_check
      _
    $region31: #{tpu_custom_call.1} parent=1 // pred_check_branch
      %71 = sbr.rel (0) target = $region33
    $region32: #{tpu_custom_call.1} parent=1 // pred_region
      %72 = dma.done [#allocation3], 1024
    $region33: #{tpu_custom_call.1} parent=1 // pred_fallthru
      _
    // Predicated region
    $region34: #{tpu_custom_call.1} parent=1 // pred_check
      _
    $region35: #{tpu_custom_call.1} parent=1 // pred_check_branch
      %74 = sbr.rel (0) target = $region37
    $region36: #{tpu_custom_call.1} parent=1 // pred_region
      %75 = dma.done [#allocation6], 1024
    $region37: #{tpu_custom_call.1} parent=1 // pred_fallthru
      _
    // Predicated region
    $region38: #{tpu_custom_call.1} parent=1 // pred_check
      _
    $region39: #{tpu_custom_call.1} parent=1 // pred_check_branch
      %77 = sbr.rel (0) target = $region41
    $region40: #{tpu_custom_call.1} parent=1 // pred_region
      %78 = dma.done [#allocation6], 9216
    $region41: #{tpu_custom_call.1} parent=1 // pred_fallthru
      _
    // Predicated region
    $region42: #{tpu_custom_call.1} parent=1 // pred_check
      _
    $region43: #{tpu_custom_call.1} parent=1 // pred_check_branch
      %80 = sbr.rel (0) target = $region45
    $region44: #{tpu_custom_call.1} parent=1 // pred_region
      %81 = dma.done [#allocation9], 1024
    $region45: #{tpu_custom_call.1} parent=1 // pred_fallthru
      _
    %v83 = vld [vmem:[#allocation2] sm:$0xf]
    %v84 = vld [vmem:[#allocation2 + $0x4] sm:$0xf]
    %v85 = vld [vmem:[#allocation2 + $0x8] sm:$0xf]
    %v86 = vld [vmem:[#allocation2 + $0xc] sm:$0xf]
    %v87 = vld [vmem:[#allocation2 + $0x10] sm:$0xf]
    %v88 = vld [vmem:[#allocation2 + $0x14] sm:$0xf]
    %v89 = vld [vmem:[#allocation2 + $0x18] sm:$0xf]
    %v90 = vld [vmem:[#allocation2 + $0x1c] sm:$0xf]
    %v91 = vld [vmem:[#allocation2 + $0x20] sm:$0xf]
    %v92 = vld [vmem:[#allocation2 + $0x24] sm:$0xf]
    %v93 = vld [vmem:[#allocation2 + $0x28] sm:$0xf]
    %v94 = vld [vmem:[#allocation2 + $0x2c] sm:$0xf]
    %v95 = vld [vmem:[#allocation2 + $0x30] sm:$0xf]
    %v96 = vld [vmem:[#allocation2 + $0x34] sm:$0xf]
    %v97 = vld [vmem:[#allocation2 + $0x38] sm:$0xf]
    %v98 = vld [vmem:[#allocation2 + $0x3c] sm:$0xf]
    %v99 = vld [vmem:[#allocation5] sm:$0xf]
    %v100 = vld [vmem:[#allocation5 + $0x4] sm:$0xf]
    %v101 = vld [vmem:[#allocation5 + $0x8] sm:$0xf]
    %v102 = vld [vmem:[#allocation5 + $0xc] sm:$0xf]
    %v103 = vld [vmem:[#allocation5 + $0x10] sm:$0xf]
    %v104 = vld [vmem:[#allocation5 + $0x14] sm:$0xf]
    %v105 = vld [vmem:[#allocation5 + $0x18] sm:$0xf]
    %v106 = vld [vmem:[#allocation5 + $0x1c] sm:$0xf]
    %v107 = vld [vmem:[#allocation5 + $0x20] sm:$0xf]
    %v108 = vld [vmem:[#allocation5 + $0x24] sm:$0xf]
    %v109 = vld [vmem:[#allocation5 + $0x28] sm:$0xf]
    %v110 = vld [vmem:[#allocation5 + $0x2c] sm:$0xf]
    %v111 = vld [vmem:[#allocation5 + $0x30] sm:$0xf]
    %v112 = vld [vmem:[#allocation5 + $0x34] sm:$0xf]
    %v113 = vld [vmem:[#allocation5 + $0x38] sm:$0xf]
    %v114 = vld [vmem:[#allocation5 + $0x3c] sm:$0xf]
    %v115 = vld [vmem:[%s2] sm:$0x1]
    %v117 = vlaneseq
    %v118 = vshrl.u32 %v117, 7
    %v119 = vsub.s32 0, %v118
    %v120 = vrot.slane %v115, %v119
    %v138 = vunpack.c.l.b16 %v83
    %v139 = vunpack.c.l.b16 %v84
    %v140 = vunpack.c.l.b16 %v85
    %v141 = vunpack.c.l.b16 %v86
    %v142 = vunpack.c.l.b16 %v87
    %v143 = vunpack.c.l.b16 %v88
    %v144 = vunpack.c.l.b16 %v89
    %v145 = vunpack.c.l.b16 %v90
    %v146 = vunpack.c.l.b16 %v91
    %v147 = vunpack.c.l.b16 %v92
    %v148 = vunpack.c.l.b16 %v93
    %v149 = vunpack.c.l.b16 %v94
    %v150 = vunpack.c.l.b16 %v95
    %v151 = vunpack.c.l.b16 %v96
    %v152 = vunpack.c.l.b16 %v97
    %v153 = vunpack.c.l.b16 %v98
    %v154 = vpack.c.b16 %v139, %v138
    %v155 = vpack.c.b16 %v141, %v140
    %v156 = vpack.c.b16 %v143, %v142
    %v157 = vpack.c.b16 %v145, %v144
    %v158 = vpack.c.b16 %v147, %v146
    %v159 = vpack.c.b16 %v149, %v148
    %v160 = vpack.c.b16 %v151, %v150
    %v161 = vpack.c.b16 %v153, %v152
    %v186 = vunpack.c.l.b16 %v99
    %v187 = vunpack.c.l.b16 %v100
    %v188 = vunpack.c.l.b16 %v101
    %v189 = vunpack.c.l.b16 %v102
    %v190 = vunpack.c.l.b16 %v103
    %v191 = vunpack.c.l.b16 %v104
    %v192 = vunpack.c.l.b16 %v105
    %v193 = vunpack.c.l.b16 %v106
    %v194 = vunpack.c.l.b16 %v107
    %v195 = vunpack.c.l.b16 %v108
    %v196 = vunpack.c.l.b16 %v109
    %v197 = vunpack.c.l.b16 %v110
    %v198 = vunpack.c.l.b16 %v111
    %v199 = vunpack.c.l.b16 %v112
    %v200 = vunpack.c.l.b16 %v113
    %v201 = vunpack.c.l.b16 %v114
    %v202 = vpack.c.b16 %v187, %v186
    %v203 = vpack.c.b16 %v189, %v188
    %v204 = vpack.c.b16 %v191, %v190
    %v205 = vpack.c.b16 %v193, %v192
    %v206 = vpack.c.b16 %v195, %v194
    %v207 = vpack.c.b16 %v197, %v196
    %v208 = vpack.c.b16 %v199, %v198
    %v209 = vpack.c.b16 %v201, %v200
    %218 = vmatprep.subr.bf16.mxu0 0
    %219 = vmatpush1.bf16.msra.mxu0 %v202
    %220 = vmatprep.subr.bf16.mxu0 0
    %221 = vmatpush1.bf16.msra.mxu0 %v203
    %222 = vmatprep.subr.bf16.mxu0 0
    %223 = vmatpush1.bf16.msra.mxu0 %v204
    %224 = vmatprep.subr.bf16.mxu0 0
    %225 = vmatpush1.bf16.msra.mxu0 %v205
    %226 = vmatprep.subr.bf16.mxu0 0
    %227 = vmatpush1.bf16.msra.mxu0 %v206
    %228 = vmatprep.subr.bf16.mxu0 0
    %229 = vmatpush1.bf16.msra.mxu0 %v207
    %230 = vmatprep.subr.bf16.mxu0 0
    %231 = vmatpush1.bf16.msra.mxu0 %v208
    %232 = vmatprep.subr.bf16.mxu0 0
    %233 = vmatpush1.bf16.msra.mxu0 %v209
    %234 = vmatprep.subr.bf16.mxu0 0
    %235 = vmatpush1.bf16.msra.mxu0 0
    %236 = vmatprep.subr.bf16.mxu0 0
    %237 = vmatpush1.bf16.msra.mxu0 0
    %238 = vmatprep.subr.bf16.mxu0 0
    %239 = vmatpush1.bf16.msra.mxu0 0
    %240 = vmatprep.subr.bf16.mxu0 0
    %241 = vmatpush1.bf16.msra.mxu0 0
    %242 = vmatprep.subr.bf16.mxu0 0
    %243 = vmatpush1.bf16.msra.mxu0 0
    %244 = vmatprep.subr.bf16.mxu0 0
    %245 = vmatpush1.bf16.msra.mxu0 0
    %246 = vmatprep.subr.bf16.mxu0 0
    %247 = vmatpush1.bf16.msra.mxu0 0
    %248 = vmatprep.subr.bf16.mxu0 0
    %249 = vmatpush1.bf16.msra.mxu0 0
    %250 = vmatprep.mubr.bf16.mxu0 0
    %251 = vmatmul.mubr.bf16.gmra.mrb[0].mxu0 %v154
    %v252 = vpop.f32.mrb[0].mxu0
    %v253 = vadd.f32 %v120, %v252
    %v254 = vpop.f32.mrb[0].mxu0
    %v255 = vpop.f32.mrb[0].mxu0
    %v256 = vadd.f32 %v120, %v255
    %v257 = vpop.f32.mrb[0].mxu0
    %258 = vmatprep.mubr.bf16.mxu0 0
    %259 = vmatmul.mubr.bf16.gmra.mrb[0].mxu0 %v155
    %v260 = vpop.f32.mrb[0].mxu0
    %v261 = vadd.f32 %v120, %v260
    %v262 = vpop.f32.mrb[0].mxu0
    %v263 = vpop.f32.mrb[0].mxu0
    %v264 = vadd.f32 %v120, %v263
    %v265 = vpop.f32.mrb[0].mxu0
    %266 = vmatprep.mubr.bf16.mxu0 0
    %267 = vmatmul.mubr.bf16.gmra.mrb[0].mxu0 %v156
    %v268 = vpop.f32.mrb[0].mxu0
    %v269 = vadd.f32 %v120, %v268
    %v270 = vpop.f32.mrb[0].mxu0
    %v271 = vpop.f32.mrb[0].mxu0
    %v272 = vadd.f32 %v120, %v271
    %v273 = vpop.f32.mrb[0].mxu0
    %274 = vmatprep.mubr.bf16.mxu0 0
    %275 = vmatmul.mubr.bf16.gmra.mrb[0].mxu0 %v157
    %v276 = vpop.f32.mrb[0].mxu0
    %v277 = vadd.f32 %v120, %v276
    %v278 = vpop.f32.mrb[0].mxu0
    %v279 = vpop.f32.mrb[0].mxu0
    %v280 = vadd.f32 %v120, %v279
    %v281 = vpop.f32.mrb[0].mxu0
    %282 = vmatprep.mubr.bf16.mxu0 0
    %283 = vmatmul.mubr.bf16.gmra.mrb[0].mxu0 %v158
    %v284 = vpop.f32.mrb[0].mxu0
    %v285 = vadd.f32 %v120, %v284
    %v286 = vpop.f32.mrb[0].mxu0
    %v287 = vpop.f32.mrb[0].mxu0
    %v288 = vadd.f32 %v120, %v287
    %v289 = vpop.f32.mrb[0].mxu0
    %290 = vmatprep.mubr.bf16.mxu0 0
    %291 = vmatmul.mubr.bf16.gmra.mrb[0].mxu0 %v159
    %v292 = vpop.f32.mrb[0].mxu0
    %v293 = vadd.f32 %v120, %v292
    %v294 = vpop.f32.mrb[0].mxu0
    %v295 = vpop.f32.mrb[0].mxu0
    %v296 = vadd.f32 %v120, %v295
    %v297 = vpop.f32.mrb[0].mxu0
    %298 = vmatprep.mubr.bf16.mxu0 0
    %299 = vmatmul.mubr.bf16.gmra.mrb[0].mxu0 %v160
    %v300 = vpop.f32.mrb[0].mxu0
    %v301 = vadd.f32 %v120, %v300
    %v302 = vpop.f32.mrb[0].mxu0
    %v303 = vpop.f32.mrb[0].mxu0
    %v304 = vadd.f32 %v120, %v303
    %v305 = vpop.f32.mrb[0].mxu0
    %306 = vmatprep.mubr.bf16.mxu0 0
    %307 = vmatmul.mubr.bf16.gmra.mrb[0].mxu0 %v161
    %v308 = vpop.f32.mrb[0].mxu0
    %v309 = vadd.f32 %v120, %v308
    %v310 = vpop.f32.mrb[0].mxu0
    %v311 = vpop.f32.mrb[0].mxu0
    %v312 = vadd.f32 %v120, %v311
    %v313 = vpop.f32.mrb[0].mxu0
    %314 = vdwg.mxu0
    %v315 = vmax.f32 %v253, 0.0
    %v316 = vmax.f32 %v256, 0.0
    %v317 = vmax.f32 %v261, 0.0
    %v318 = vmax.f32 %v264, 0.0
    %v319 = vmax.f32 %v269, 0.0
    %v320 = vmax.f32 %v272, 0.0
    %v321 = vmax.f32 %v277, 0.0
    %v322 = vmax.f32 %v280, 0.0
    %v323 = vmax.f32 %v285, 0.0
    %v324 = vmax.f32 %v288, 0.0
    %v325 = vmax.f32 %v293, 0.0
    %v326 = vmax.f32 %v296, 0.0
    %v327 = vmax.f32 %v301, 0.0
    %v328 = vmax.f32 %v304, 0.0
    %v329 = vmax.f32 %v309, 0.0
    %v330 = vmax.f32 %v312, 0.0
    %v331 = vlaneseq
    %v332 = vshrl.u32 %v331, 7
    %vm333 = vcmp.gt.s32.totalorder %v332, 0
    %v334 = vsel %vm333, 1, 0
    %v335 = vcvt.s32.f32 %v334
    %vm336 = vcmp.lt.s32.totalorder %v332, 7
    %v337 = vsel %vm336, 1, 0
    %v338 = vcvt.s32.f32 %v337
    %v339 = vrot.slane %v315, 7
    %v340 = vrot.slane %v316, 7
    %v341 = vrot.slane %v317, 7
    %v342 = vrot.slane %v318, 7
    %v343 = vrot.slane %v319, 7
    %v344 = vrot.slane %v320, 7
    %v345 = vrot.slane %v321, 7
    %v346 = vrot.slane %v322, 7
    %v347 = vrot.slane %v323, 7
    %v348 = vrot.slane %v324, 7
    %v349 = vrot.slane %v325, 7
    %v350 = vrot.slane %v326, 7
    %v351 = vrot.slane %v327, 7
    %v352 = vrot.slane %v328, 7
    %v353 = vrot.slane %v329, 7
    %v354 = vrot.slane %v330, 7
    %v355 = vmul.f32 %v339, %v335
    %v356 = vmul.f32 %v340, %v335
    %v357 = vmul.f32 %v341, %v335
    %v358 = vmul.f32 %v342, %v335
    %v359 = vmul.f32 %v343, %v335
    %v360 = vmul.f32 %v344, %v335
    %v361 = vmul.f32 %v345, %v335
    %v362 = vmul.f32 %v346, %v335
    %v363 = vmul.f32 %v347, %v335
    %v364 = vmul.f32 %v348, %v335
    %v365 = vmul.f32 %v349, %v335
    %v366 = vmul.f32 %v350, %v335
    %v367 = vmul.f32 %v351, %v335
    %v368 = vmul.f32 %v352, %v335
    %v369 = vmul.f32 %v353, %v335
    %v370 = vmul.f32 %v354, %v335
    %v371 = vrot.slane %v315, 1
    %v372 = vrot.slane %v316, 1
    %v373 = vrot.slane %v317, 1
    %v374 = vrot.slane %v318, 1
    %v375 = vrot.slane %v319, 1
    %v376 = vrot.slane %v320, 1
    %v377 = vrot.slane %v321, 1
    %v378 = vrot.slane %v322, 1
    %v379 = vrot.slane %v323, 1
    %v380 = vrot.slane %v324, 1
    %v381 = vrot.slane %v325, 1
    %v382 = vrot.slane %v326, 1
    %v383 = vrot.slane %v327, 1
    %v384 = vrot.slane %v328, 1
    %v385 = vrot.slane %v329, 1
    %v386 = vrot.slane %v330, 1
    %v387 = vmul.f32 %v371, %v338
    %v388 = vmul.f32 %v372, %v338
    %v389 = vmul.f32 %v373, %v338
    %v390 = vmul.f32 %v374, %v338
    %v391 = vmul.f32 %v375, %v338
    %v392 = vmul.f32 %v376, %v338
    %v393 = vmul.f32 %v377, %v338
    %v394 = vmul.f32 %v378, %v338
    %v395 = vmul.f32 %v379, %v338
    %v396 = vmul.f32 %v380, %v338
    %v397 = vmul.f32 %v381, %v338
    %v398 = vmul.f32 %v382, %v338
    %v399 = vmul.f32 %v383, %v338
    %v400 = vmul.f32 %v384, %v338
    %v401 = vmul.f32 %v385, %v338
    %v402 = vmul.f32 %v386, %v338
    %v403 = vpack.c.bf16 %v356, %v355
    %v404 = vpack.c.bf16 %v358, %v357
    %v405 = vpack.c.bf16 %v360, %v359
    %v406 = vpack.c.bf16 %v362, %v361
    %v407 = vpack.c.bf16 %v364, %v363
    %v408 = vpack.c.bf16 %v366, %v365
    %v409 = vpack.c.bf16 %v368, %v367
    %v410 = vpack.c.bf16 %v370, %v369
    %v411 = vpack.c.bf16 %v316, %v315
    %v412 = vpack.c.bf16 %v318, %v317
    %v413 = vpack.c.bf16 %v320, %v319
    %v414 = vpack.c.bf16 %v322, %v321
    %v415 = vpack.c.bf16 %v324, %v323
    %v416 = vpack.c.bf16 %v326, %v325
    %v417 = vpack.c.bf16 %v328, %v327
    %v418 = vpack.c.bf16 %v330, %v329
    %v419 = vpack.c.bf16 %v388, %v387
    %v420 = vpack.c.bf16 %v390, %v389
    %v421 = vpack.c.bf16 %v392, %v391
    %v422 = vpack.c.bf16 %v394, %v393
    %v423 = vpack.c.bf16 %v396, %v395
    %v424 = vpack.c.bf16 %v398, %v397
    %v425 = vpack.c.bf16 %v400, %v399
    %v426 = vpack.c.bf16 %v402, %v401
    %v427 = vld [vmem:[#allocation7] sm:$0xf]
    %v428 = vld [vmem:[#allocation7 + $0x4] sm:$0xf]
    %v429 = vld [vmem:[#allocation7 + $0x8] sm:$0xf]
    %v430 = vld [vmem:[#allocation7 + $0xc] sm:$0xf]
    %v431 = vld [vmem:[#allocation7 + $0x10] sm:$0xf]
    %v432 = vld [vmem:[#allocation7 + $0x14] sm:$0xf]
    %v433 = vld [vmem:[#allocation7 + $0x18] sm:$0xf]
    %v434 = vld [vmem:[#allocation7 + $0x1c] sm:$0xf]
    %v435 = vld [vmem:[#allocation7 + $0x20] sm:$0xf]
    %v436 = vld [vmem:[#allocation7 + $0x24] sm:$0xf]
    %v437 = vld [vmem:[#allocation7 + $0x28] sm:$0xf]
    %v438 = vld [vmem:[#allocation7 + $0x2c] sm:$0xf]
    %v439 = vld [vmem:[#allocation7 + $0x30] sm:$0xf]
    %v440 = vld [vmem:[#allocation7 + $0x34] sm:$0xf]
    %v441 = vld [vmem:[#allocation7 + $0x38] sm:$0xf]
    %v442 = vld [vmem:[#allocation7 + $0x3c] sm:$0xf]
    %v443 = vld [vmem:[#allocation7 + $0x40] sm:$0xf]
    %v444 = vld [vmem:[#allocation7 + $0x44] sm:$0xf]
    %v445 = vld [vmem:[#allocation7 + $0x48] sm:$0xf]
    %v446 = vld [vmem:[#allocation7 + $0x4c] sm:$0xf]
    %v447 = vld [vmem:[#allocation7 + $0x50] sm:$0xf]
    %v448 = vld [vmem:[#allocation7 + $0x54] sm:$0xf]
    %v449 = vld [vmem:[#allocation7 + $0x58] sm:$0xf]
    %v450 = vld [vmem:[#allocation7 + $0x5c] sm:$0xf]
    %v451 = vld [vmem:[#allocation7 + $0x60] sm:$0xf]
    %v452 = vld [vmem:[#allocation7 + $0x64] sm:$0xf]
    %v453 = vld [vmem:[#allocation7 + $0x68] sm:$0xf]
    %v454 = vld [vmem:[#allocation7 + $0x6c] sm:$0xf]
    %v455 = vld [vmem:[#allocation7 + $0x70] sm:$0xf]
    %v456 = vld [vmem:[#allocation7 + $0x74] sm:$0xf]
    %v457 = vld [vmem:[#allocation7 + $0x78] sm:$0xf]
    %v458 = vld [vmem:[#allocation7 + $0x7c] sm:$0xf]
    %v459 = vld [vmem:[#allocation7 + $0x80] sm:$0xf]
    %v460 = vld [vmem:[#allocation7 + $0x84] sm:$0xf]
    %v461 = vld [vmem:[#allocation7 + $0x88] sm:$0xf]
    %v462 = vld [vmem:[#allocation7 + $0x8c] sm:$0xf]
    %v463 = vld [vmem:[#allocation7 + $0x90] sm:$0xf]
    %v464 = vld [vmem:[#allocation7 + $0x94] sm:$0xf]
    %v465 = vld [vmem:[#allocation7 + $0x98] sm:$0xf]
    %v466 = vld [vmem:[#allocation7 + $0x9c] sm:$0xf]
    %v467 = vld [vmem:[#allocation7 + $0xa0] sm:$0xf]
    %v468 = vld [vmem:[#allocation7 + $0xa4] sm:$0xf]
    %v469 = vld [vmem:[#allocation7 + $0xa8] sm:$0xf]
    %v470 = vld [vmem:[#allocation7 + $0xac] sm:$0xf]
    %v471 = vld [vmem:[#allocation7 + $0xb0] sm:$0xf]
    %v472 = vld [vmem:[#allocation7 + $0xb4] sm:$0xf]
    %v473 = vld [vmem:[#allocation7 + $0xb8] sm:$0xf]
    %v474 = vld [vmem:[#allocation7 + $0xbc] sm:$0xf]
    %v523 = vunpack.c.l.b16 %v427
    %v524 = vunpack.c.l.b16 %v428
    %v525 = vunpack.c.l.b16 %v429
    %v526 = vunpack.c.l.b16 %v430
    %v527 = vunpack.c.l.b16 %v431
    %v528 = vunpack.c.l.b16 %v432
    %v529 = vunpack.c.l.b16 %v433
    %v530 = vunpack.c.l.b16 %v434
    %v531 = vunpack.c.l.b16 %v435
    %v532 = vunpack.c.l.b16 %v436
    %v533 = vunpack.c.l.b16 %v437
    %v534 = vunpack.c.l.b16 %v438
    %v535 = vunpack.c.l.b16 %v439
    %v536 = vunpack.c.l.b16 %v440
    %v537 = vunpack.c.l.b16 %v441
    %v538 = vunpack.c.l.b16 %v442
    %v539 = vunpack.c.l.b16 %v443
    %v540 = vunpack.c.l.b16 %v444
    %v541 = vunpack.c.l.b16 %v445
    %v542 = vunpack.c.l.b16 %v446
    %v543 = vunpack.c.l.b16 %v447
    %v544 = vunpack.c.l.b16 %v448
    %v545 = vunpack.c.l.b16 %v449
    %v546 = vunpack.c.l.b16 %v450
    %v547 = vunpack.c.l.b16 %v451
    %v548 = vunpack.c.l.b16 %v452
    %v549 = vunpack.c.l.b16 %v453
    %v550 = vunpack.c.l.b16 %v454
    %v551 = vunpack.c.l.b16 %v455
    %v552 = vunpack.c.l.b16 %v456
    %v553 = vunpack.c.l.b16 %v457
    %v554 = vunpack.c.l.b16 %v458
    %v555 = vunpack.c.l.b16 %v459
    %v556 = vunpack.c.l.b16 %v460
    %v557 = vunpack.c.l.b16 %v461
    %v558 = vunpack.c.l.b16 %v462
    %v559 = vunpack.c.l.b16 %v463
    %v560 = vunpack.c.l.b16 %v464
    %v561 = vunpack.c.l.b16 %v465
    %v562 = vunpack.c.l.b16 %v466
    %v563 = vunpack.c.l.b16 %v467
    %v564 = vunpack.c.l.b16 %v468
    %v565 = vunpack.c.l.b16 %v469
    %v566 = vunpack.c.l.b16 %v470
    %v567 = vunpack.c.l.b16 %v471
    %v568 = vunpack.c.l.b16 %v472
    %v569 = vunpack.c.l.b16 %v473
    %v570 = vunpack.c.l.b16 %v474
    %v571 = vpack.c.b16 %v524, %v523
    %v572 = vpack.c.b16 %v526, %v525
    %v573 = vpack.c.b16 %v528, %v527
    %v574 = vpack.c.b16 %v530, %v529
    %v575 = vpack.c.b16 %v532, %v531
    %v576 = vpack.c.b16 %v534, %v533
    %v577 = vpack.c.b16 %v536, %v535
    %v578 = vpack.c.b16 %v538, %v537
    %v579 = vpack.c.b16 %v540, %v539
    %v580 = vpack.c.b16 %v542, %v541
    %v581 = vpack.c.b16 %v544, %v543
    %v582 = vpack.c.b16 %v546, %v545
    %v583 = vpack.c.b16 %v548, %v547
    %v584 = vpack.c.b16 %v550, %v549
    %v585 = vpack.c.b16 %v552, %v551
    %v586 = vpack.c.b16 %v554, %v553
    %v587 = vpack.c.b16 %v556, %v555
    %v588 = vpack.c.b16 %v558, %v557
    %v589 = vpack.c.b16 %v560, %v559
    %v590 = vpack.c.b16 %v562, %v561
    %v591 = vpack.c.b16 %v564, %v563
    %v592 = vpack.c.b16 %v566, %v565
    %v593 = vpack.c.b16 %v568, %v567
    %v594 = vpack.c.b16 %v570, %v569
    %619 = vmatprep.subr.bf16.mxu0 0
    %620 = vmatpush1.bf16.msra.mxu0 %v571
    %621 = vmatprep.subr.bf16.mxu0 0
    %622 = vmatpush1.bf16.msra.mxu0 %v572
    %623 = vmatprep.subr.bf16.mxu0 0
    %624 = vmatpush1.bf16.msra.mxu0 %v573
    %625 = vmatprep.subr.bf16.mxu0 0
    %626 = vmatpush1.bf16.msra.mxu0 %v574
    %627 = vmatprep.subr.bf16.mxu0 0
    %628 = vmatpush1.bf16.msra.mxu0 %v575
    %629 = vmatprep.subr.bf16.mxu0 0
    %630 = vmatpush1.bf16.msra.mxu0 %v576
    %631 = vmatprep.subr.bf16.mxu0 0
    %632 = vmatpush1.bf16.msra.mxu0 %v577
    %633 = vmatprep.subr.bf16.mxu0 0
    %634 = vmatpush1.bf16.msra.mxu0 %v578
    %635 = vmatprep.subr.bf16.mxu0 0
    %636 = vmatpush1.bf16.msra.mxu0 %v579
    %637 = vmatprep.subr.bf16.mxu0 0
    %638 = vmatpush1.bf16.msra.mxu0 %v580
    %639 = vmatprep.subr.bf16.mxu0 0
    %640 = vmatpush1.bf16.msra.mxu0 %v581
    %641 = vmatprep.subr.bf16.mxu0 0
    %642 = vmatpush1.bf16.msra.mxu0 %v582
    %643 = vmatprep.subr.bf16.mxu0 0
    %644 = vmatpush1.bf16.msra.mxu0 %v583
    %645 = vmatprep.subr.bf16.mxu0 0
    %646 = vmatpush1.bf16.msra.mxu0 %v584
    %647 = vmatprep.subr.bf16.mxu0 0
    %648 = vmatpush1.bf16.msra.mxu0 %v585
    %649 = vmatprep.subr.bf16.mxu0 0
    %650 = vmatpush1.bf16.msra.mxu0 %v586
    %651 = vmatprep.mubr.bf16.mxu0 %v411
    %652 = vmatmul.mubr.bf16.gmra.mrb[0].mxu0 %v403
    %v653 = vpop.f32.mrb[0].mxu0
    %v654 = vadd.f32 0.0, %v653
    %v655 = vpop.f32.mrb[0].mxu0
    %v656 = vpop.f32.mrb[0].mxu0
    %v657 = vadd.f32 0.0, %v656
    %v658 = vpop.f32.mrb[0].mxu0
    %659 = vmatprep.mubr.bf16.mxu0 %v412
    %660 = vmatmul.mubr.bf16.gmra.mrb[0].mxu0 %v404
    %v661 = vpop.f32.mrb[0].mxu0
    %v662 = vadd.f32 0.0, %v661
    %v663 = vpop.f32.mrb[0].mxu0
    %v664 = vpop.f32.mrb[0].mxu0
    %v665 = vadd.f32 0.0, %v664
    %v666 = vpop.f32.mrb[0].mxu0
    %667 = vmatprep.mubr.bf16.mxu0 %v413
    %668 = vmatmul.mubr.bf16.gmra.mrb[0].mxu0 %v405
    %v669 = vpop.f32.mrb[0].mxu0
    %v670 = vadd.f32 0.0, %v669
    %v671 = vpop.f32.mrb[0].mxu0
    %v672 = vpop.f32.mrb[0].mxu0
    %v673 = vadd.f32 0.0, %v672
    %v674 = vpop.f32.mrb[0].mxu0
    %675 = vmatprep.mubr.bf16.mxu0 %v414
    %676 = vmatmul.mubr.bf16.gmra.mrb[0].mxu0 %v406
    %v677 = vpop.f32.mrb[0].mxu0
    %v678 = vadd.f32 0.0, %v677
    %v679 = vpop.f32.mrb[0].mxu0
    %v680 = vpop.f32.mrb[0].mxu0
    %v681 = vpop.f32.mrb[0].mxu0
    %682 = vmatprep.mubr.bf16.mxu0 %v415
    %683 = vmatmul.mubr.bf16.gmra.mrb[0].mxu0 %v407
    %v684 = vpop.f32.mrb[0].mxu0
    %v685 = vadd.f32 0.0, %v684
    %v686 = vpop.f32.mrb[0].mxu0
    %v687 = vpop.f32.mrb[0].mxu0
    %v688 = vadd.f32 0.0, %v687
    %v689 = vpop.f32.mrb[0].mxu0
    %690 = vmatprep.mubr.bf16.mxu0 %v416
    %691 = vmatmul.mubr.bf16.gmra.mrb[0].mxu0 %v408
    %v692 = vpop.f32.mrb[0].mxu0
    %v693 = vadd.f32 0.0, %v692
    %v694 = vpop.f32.mrb[0].mxu0
    %v695 = vpop.f32.mrb[0].mxu0
    %v696 = vadd.f32 0.0, %v695
    %v697 = vpop.f32.mrb[0].mxu0
    %698 = vmatprep.mubr.bf16.mxu0 %v417
    %699 = vmatmul.mubr.bf16.gmra.mrb[0].mxu0 %v409
    %v700 = vpop.f32.mrb[0].mxu0
    %v701 = vadd.f32 0.0, %v700
    %v702 = vpop.f32.mrb[0].mxu0
    %v703 = vpop.f32.mrb[0].mxu0
    %v704 = vadd.f32 0.0, %v703
    %v705 = vpop.f32.mrb[0].mxu0
    %706 = vmatprep.mubr.bf16.mxu0 %v418
    %707 = vmatmul.mubr.bf16.gmra.mrb[0].mxu0 %v410
    %v708 = vpop.f32.mrb[0].mxu0
    %v709 = vadd.f32 0.0, %v708
    %v710 = vpop.f32.mrb[0].mxu0
    %v711 = vpop.f32.mrb[0].mxu0
    %v712 = vpop.f32.mrb[0].mxu0
    %713 = vdwg.mxu0
    %714 = vmatprep.subr.bf16.mxu0 0
    %715 = vmatpush1.bf16.msra.mxu0 %v587
    %716 = vmatprep.subr.bf16.mxu0 0
    %717 = vmatpush1.bf16.msra.mxu0 %v588
    %718 = vmatprep.subr.bf16.mxu0 0
    %719 = vmatpush1.bf16.msra.mxu0 %v589
    %720 = vmatprep.subr.bf16.mxu0 0
    %721 = vmatpush1.bf16.msra.mxu0 %v590
    %722 = vmatprep.subr.bf16.mxu0 0
    %723 = vmatpush1.bf16.msra.mxu0 %v591
    %724 = vmatprep.subr.bf16.mxu0 0
    %725 = vmatpush1.bf16.msra.mxu0 %v592
    %726 = vmatprep.subr.bf16.mxu0 0
    %727 = vmatpush1.bf16.msra.mxu0 %v593
    %728 = vmatprep.subr.bf16.mxu0 0
    %729 = vmatpush1.bf16.msra.mxu0 %v594
    %730 = vmatprep.subr.bf16.mxu0 0
    %731 = vmatpush1.bf16.msra.mxu0 0
    %732 = vmatprep.subr.bf16.mxu0 0
    %733 = vmatpush1.bf16.msra.mxu0 0
    %734 = vmatprep.subr.bf16.mxu0 0
    %735 = vmatpush1.bf16.msra.mxu0 0
    %736 = vmatprep.subr.bf16.mxu0 0
    %737 = vmatpush1.bf16.msra.mxu0 0
    %738 = vmatprep.subr.bf16.mxu0 0
    %739 = vmatpush1.bf16.msra.mxu0 0
    %740 = vmatprep.subr.bf16.mxu0 0
    %741 = vmatpush1.bf16.msra.mxu0 0
    %742 = vmatprep.subr.bf16.mxu0 0
    %743 = vmatpush1.bf16.msra.mxu0 0
    %744 = vmatprep.subr.bf16.mxu0 0
    %745 = vmatpush1.bf16.msra.mxu0 0
    %746 = vmatprep.mubr.bf16.mxu0 0
    %747 = vmatmul.mubr.bf16.gmra.mrb[0].mxu0 %v419
    %v748 = vpop.f32.mrb[0].mxu0
    %v749 = vadd.f32 %v654, %v748
    %v750 = vpop.f32.mrb[0].mxu0
    %v751 = vpop.f32.mrb[0].mxu0
    %v752 = vadd.f32 %v657, %v751
    %v753 = vpop.f32.mrb[0].mxu0
    %754 = vmatprep.mubr.bf16.mxu0 0
    %755 = vmatmul.mubr.bf16.gmra.mrb[0].mxu0 %v420
    %v756 = vpop.f32.mrb[0].mxu0
    %v757 = vadd.f32 %v662, %v756
    %v758 = vpop.f32.mrb[0].mxu0
    %v759 = vpop.f32.mrb[0].mxu0
    %v760 = vadd.f32 %v665, %v759
    %v761 = vpop.f32.mrb[0].mxu0
    %762 = vmatprep.mubr.bf16.mxu0 0
    %763 = vmatmul.mubr.bf16.gmra.mrb[0].mxu0 %v421
    %v764 = vpop.f32.mrb[0].mxu0
    %v765 = vadd.f32 %v670, %v764
    %v766 = vpop.f32.mrb[0].mxu0
    %v767 = vpop.f32.mrb[0].mxu0
    %v768 = vadd.f32 %v673, %v767
    %v769 = vpop.f32.mrb[0].mxu0
    %770 = vmatprep.mubr.bf16.mxu0 0
    %771 = vmatmul.mubr.bf16.gmra.mrb[0].mxu0 %v422
    %v772 = vpop.f32.mrb[0].mxu0
    %v773 = vadd.f32 %v678, %v772
    %v774 = vpop.f32.mrb[0].mxu0
    %v775 = vpop.f32.mrb[0].mxu0
    %v776 = vpop.f32.mrb[0].mxu0
    %777 = vmatprep.mubr.bf16.mxu0 0
    %778 = vmatmul.mubr.bf16.gmra.mrb[0].mxu0 %v423
    %v779 = vpop.f32.mrb[0].mxu0
    %v780 = vadd.f32 %v685, %v779
    %v781 = vpop.f32.mrb[0].mxu0
    %v782 = vpop.f32.mrb[0].mxu0
    %v783 = vadd.f32 %v688, %v782
    %v784 = vpop.f32.mrb[0].mxu0
    %785 = vmatprep.mubr.bf16.mxu0 0
    %786 = vmatmul.mubr.bf16.gmra.mrb[0].mxu0 %v424
    %v787 = vpop.f32.mrb[0].mxu0
    %v788 = vadd.f32 %v693, %v787
    %v789 = vpop.f32.mrb[0].mxu0
    %v790 = vpop.f32.mrb[0].mxu0
    %v791 = vadd.f32 %v696, %v790
    %v792 = vpop.f32.mrb[0].mxu0
    %793 = vmatprep.mubr.bf16.mxu0 0
    %794 = vmatmul.mubr.bf16.gmra.mrb[0].mxu0 %v425
    %v795 = vpop.f32.mrb[0].mxu0
    %v796 = vadd.f32 %v701, %v795
    %v797 = vpop.f32.mrb[0].mxu0
    %v798 = vpop.f32.mrb[0].mxu0
    %v799 = vadd.f32 %v704, %v798
    %v800 = vpop.f32.mrb[0].mxu0
    %801 = vmatprep.mubr.bf16.mxu0 0
    %802 = vmatmul.mubr.bf16.gmra.mrb[0].mxu0 %v426
    %v803 = vpop.f32.mrb[0].mxu0
    %v804 = vadd.f32 %v709, %v803
    %v805 = vpop.f32.mrb[0].mxu0
    %v806 = vpop.f32.mrb[0].mxu0
    %v807 = vpop.f32.mrb[0].mxu0
    %808 = vdwg.mxu0
    %s809 = scalar_lea.vmem [#allocation7], 192
    %v810 = vld [vmem:[%s809] sm:$0xf]
    %v811 = vld [vmem:[%s809 + $0x4] sm:$0xf]
    %v812 = vld [vmem:[%s809 + $0x8] sm:$0xf]
    %v813 = vld [vmem:[%s809 + $0xc] sm:$0xf]
    %v814 = vld [vmem:[%s809 + $0x10] sm:$0xf]
    %v815 = vld [vmem:[%s809 + $0x14] sm:$0xf]
    %v816 = vld [vmem:[%s809 + $0x18] sm:$0xf]
    %v817 = vld [vmem:[%s809 + $0x1c] sm:$0xf]
    %v818 = vld [vmem:[%s809 + $0x20] sm:$0xf]
    %v819 = vld [vmem:[%s809 + $0x24] sm:$0xf]
    %v820 = vld [vmem:[%s809 + $0x28] sm:$0xf]
    %v821 = vld [vmem:[%s809 + $0x2c] sm:$0xf]
    %v822 = vld [vmem:[%s809 + $0x30] sm:$0xf]
    %v823 = vld [vmem:[%s809 + $0x34] sm:$0xf]
    %v824 = vld [vmem:[%s809 + $0x38] sm:$0xf]
    %v825 = vld [vmem:[%s809 + $0x3c] sm:$0xf]
    %v826 = vld [vmem:[%s809 + $0x40] sm:$0xf]
    %v827 = vld [vmem:[%s809 + $0x44] sm:$0xf]
    %v828 = vld [vmem:[%s809 + $0x48] sm:$0xf]
    %v829 = vld [vmem:[%s809 + $0x4c] sm:$0xf]
    %v830 = vld [vmem:[%s809 + $0x50] sm:$0xf]
    %v831 = vld [vmem:[%s809 + $0x54] sm:$0xf]
    %v832 = vld [vmem:[%s809 + $0x58] sm:$0xf]
    %v833 = vld [vmem:[%s809 + $0x5c] sm:$0xf]
    %v834 = vld [vmem:[%s809 + $0x60] sm:$0xf]
    %v835 = vld [vmem:[%s809 + $0x64] sm:$0xf]
    %v836 = vld [vmem:[%s809 + $0x68] sm:$0xf]
    %v837 = vld [vmem:[%s809 + $0x6c] sm:$0xf]
    %v838 = vld [vmem:[%s809 + $0x70] sm:$0xf]
    %v839 = vld [vmem:[%s809 + $0x74] sm:$0xf]
    %v840 = vld [vmem:[%s809 + $0x78] sm:$0xf]
    %v841 = vld [vmem:[%s809 + $0x7c] sm:$0xf]
    %v842 = vld [vmem:[%s809 + $0x80] sm:$0xf]
    %v843 = vld [vmem:[%s809 + $0x84] sm:$0xf]
    %v844 = vld [vmem:[%s809 + $0x88] sm:$0xf]
    %v845 = vld [vmem:[%s809 + $0x8c] sm:$0xf]
    %v846 = vld [vmem:[%s809 + $0x90] sm:$0xf]
    %v847 = vld [vmem:[%s809 + $0x94] sm:$0xf]
    %v848 = vld [vmem:[%s809 + $0x98] sm:$0xf]
    %v849 = vld [vmem:[%s809 + $0x9c] sm:$0xf]
    %v850 = vld [vmem:[%s809 + $0xa0] sm:$0xf]
    %v851 = vld [vmem:[%s809 + $0xa4] sm:$0xf]
    %v852 = vld [vmem:[%s809 + $0xa8] sm:$0xf]
    %v853 = vld [vmem:[%s809 + $0xac] sm:$0xf]
    %v854 = vld [vmem:[%s809 + $0xb0] sm:$0xf]
    %v855 = vld [vmem:[%s809 + $0xb4] sm:$0xf]
    %v856 = vld [vmem:[%s809 + $0xb8] sm:$0xf]
    %v857 = vld [vmem:[%s809 + $0xbc] sm:$0xf]
    %v906 = vunpack.c.l.b16 %v810
    %v907 = vunpack.c.l.b16 %v811
    %v908 = vunpack.c.l.b16 %v812
    %v909 = vunpack.c.l.b16 %v813
    %v910 = vunpack.c.l.b16 %v814
    %v911 = vunpack.c.l.b16 %v815
    %v912 = vunpack.c.l.b16 %v816
    %v913 = vunpack.c.l.b16 %v817
    %v914 = vunpack.c.l.b16 %v818
    %v915 = vunpack.c.l.b16 %v819
    %v916 = vunpack.c.l.b16 %v820
    %v917 = vunpack.c.l.b16 %v821
    %v918 = vunpack.c.l.b16 %v822
    %v919 = vunpack.c.l.b16 %v823
    %v920 = vunpack.c.l.b16 %v824
    %v921 = vunpack.c.l.b16 %v825
    %v922 = vunpack.c.l.b16 %v826
    %v923 = vunpack.c.l.b16 %v827
    %v924 = vunpack.c.l.b16 %v828
    %v925 = vunpack.c.l.b16 %v829
    %v926 = vunpack.c.l.b16 %v830
    %v927 = vunpack.c.l.b16 %v831
    %v928 = vunpack.c.l.b16 %v832
    %v929 = vunpack.c.l.b16 %v833
    %v930 = vunpack.c.l.b16 %v834
    %v931 = vunpack.c.l.b16 %v835
    %v932 = vunpack.c.l.b16 %v836
    %v933 = vunpack.c.l.b16 %v837
    %v934 = vunpack.c.l.b16 %v838
    %v935 = vunpack.c.l.b16 %v839
    %v936 = vunpack.c.l.b16 %v840
    %v937 = vunpack.c.l.b16 %v841
    %v938 = vunpack.c.l.b16 %v842
    %v939 = vunpack.c.l.b16 %v843
    %v940 = vunpack.c.l.b16 %v844
    %v941 = vunpack.c.l.b16 %v845
    %v942 = vunpack.c.l.b16 %v846
    %v943 = vunpack.c.l.b16 %v847
    %v944 = vunpack.c.l.b16 %v848
    %v945 = vunpack.c.l.b16 %v849
    %v946 = vunpack.c.l.b16 %v850
    %v947 = vunpack.c.l.b16 %v851
    %v948 = vunpack.c.l.b16 %v852
    %v949 = vunpack.c.l.b16 %v853
    %v950 = vunpack.c.l.b16 %v854
    %v951 = vunpack.c.l.b16 %v855
    %v952 = vunpack.c.l.b16 %v856
    %v953 = vunpack.c.l.b16 %v857
    %v954 = vpack.c.b16 %v907, %v906
    %v955 = vpack.c.b16 %v909, %v908
    %v956 = vpack.c.b16 %v911, %v910
    %v957 = vpack.c.b16 %v913, %v912
    %v958 = vpack.c.b16 %v915, %v914
    %v959 = vpack.c.b16 %v917, %v916
    %v960 = vpack.c.b16 %v919, %v918
    %v961 = vpack.c.b16 %v921, %v920
    %v962 = vpack.c.b16 %v923, %v922
    %v963 = vpack.c.b16 %v925, %v924
    %v964 = vpack.c.b16 %v927, %v926
    %v965 = vpack.c.b16 %v929, %v928
    %v966 = vpack.c.b16 %v931, %v930
    %v967 = vpack.c.b16 %v933, %v932
    %v968 = vpack.c.b16 %v935, %v934
    %v969 = vpack.c.b16 %v937, %v936
    %v970 = vpack.c.b16 %v939, %v938
    %v971 = vpack.c.b16 %v941, %v940
    %v972 = vpack.c.b16 %v943, %v942
    %v973 = vpack.c.b16 %v945, %v944
    %v974 = vpack.c.b16 %v947, %v946
    %v975 = vpack.c.b16 %v949, %v948
    %v976 = vpack.c.b16 %v951, %v950
    %v977 = vpack.c.b16 %v953, %v952
    %1002 = vmatprep.subr.bf16.mxu0 0
    %1003 = vmatpush1.bf16.msra.mxu0 %v954
    %1004 = vmatprep.subr.bf16.mxu0 0
    %1005 = vmatpush1.bf16.msra.mxu0 %v955
    %1006 = vmatprep.subr.bf16.mxu0 0
    %1007 = vmatpush1.bf16.msra.mxu0 %v956
    %1008 = vmatprep.subr.bf16.mxu0 0
    %1009 = vmatpush1.bf16.msra.mxu0 %v957
    %1010 = vmatprep.subr.bf16.mxu0 0
    %1011 = vmatpush1.bf16.msra.mxu0 %v958
    %1012 = vmatprep.subr.bf16.mxu0 0
    %1013 = vmatpush1.bf16.msra.mxu0 %v959
    %1014 = vmatprep.subr.bf16.mxu0 0
    %1015 = vmatpush1.bf16.msra.mxu0 %v960
    %1016 = vmatprep.subr.bf16.mxu0 0
    %1017 = vmatpush1.bf16.msra.mxu0 %v961
    %1018 = vmatprep.subr.bf16.mxu0 0
    %1019 = vmatpush1.bf16.msra.mxu0 %v962
    %1020 = vmatprep.subr.bf16.mxu0 0
    %1021 = vmatpush1.bf16.msra.mxu0 %v963
    %1022 = vmatprep.subr.bf16.mxu0 0
    %1023 = vmatpush1.bf16.msra.mxu0 %v964
    %1024 = vmatprep.subr.bf16.mxu0 0
    %1025 = vmatpush1.bf16.msra.mxu0 %v965
    %1026 = vmatprep.subr.bf16.mxu0 0
    %1027 = vmatpush1.bf16.msra.mxu0 %v966
    %1028 = vmatprep.subr.bf16.mxu0 0
    %1029 = vmatpush1.bf16.msra.mxu0 %v967
    %1030 = vmatprep.subr.bf16.mxu0 0
    %1031 = vmatpush1.bf16.msra.mxu0 %v968
    %1032 = vmatprep.subr.bf16.mxu0 0
    %1033 = vmatpush1.bf16.msra.mxu0 %v969
    %1034 = vmatprep.mubr.bf16.mxu0 %v411
    %1035 = vmatmul.mubr.bf16.gmra.mrb[0].mxu0 %v403
    %v1036 = vpop.f32.mrb[0].mxu0
    %v1037 = vadd.f32 0.0, %v1036
    %v1038 = vpop.f32.mrb[0].mxu0
    %v1039 = vpop.f32.mrb[0].mxu0
    %v1040 = vadd.f32 0.0, %v1039
    %v1041 = vpop.f32.mrb[0].mxu0
    %1042 = vmatprep.mubr.bf16.mxu0 %v412
    %1043 = vmatmul.mubr.bf16.gmra.mrb[0].mxu0 %v404
    %v1044 = vpop.f32.mrb[0].mxu0
    %v1045 = vadd.f32 0.0, %v1044
    %v1046 = vpop.f32.mrb[0].mxu0
    %v1047 = vpop.f32.mrb[0].mxu0
    %v1048 = vadd.f32 0.0, %v1047
    %v1049 = vpop.f32.mrb[0].mxu0
    %1050 = vmatprep.mubr.bf16.mxu0 %v413
    %1051 = vmatmul.mubr.bf16.gmra.mrb[0].mxu0 %v405
    %v1052 = vpop.f32.mrb[0].mxu0
    %v1053 = vadd.f32 0.0, %v1052
    %v1054 = vpop.f32.mrb[0].mxu0
    %v1055 = vpop.f32.mrb[0].mxu0
    %v1056 = vadd.f32 0.0, %v1055
    %v1057 = vpop.f32.mrb[0].mxu0
    %1058 = vmatprep.mubr.bf16.mxu0 %v414
    %1059 = vmatmul.mubr.bf16.gmra.mrb[0].mxu0 %v406
    %v1060 = vpop.f32.mrb[0].mxu0
    %v1061 = vadd.f32 0.0, %v1060
    %v1062 = vpop.f32.mrb[0].mxu0
    %v1063 = vpop.f32.mrb[0].mxu0
    %v1064 = vadd.f32 0.0, %v1063
    %v1065 = vpop.f32.mrb[0].mxu0
    %1066 = vmatprep.mubr.bf16.mxu0 %v415
    %1067 = vmatmul.mubr.bf16.gmra.mrb[0].mxu0 %v407
    %v1068 = vpop.f32.mrb[0].mxu0
    %v1069 = vadd.f32 0.0, %v1068
    %v1070 = vpop.f32.mrb[0].mxu0
    %v1071 = vpop.f32.mrb[0].mxu0
    %v1072 = vadd.f32 0.0, %v1071
    %v1073 = vpop.f32.mrb[0].mxu0
    %1074 = vmatprep.mubr.bf16.mxu0 %v416
    %1075 = vmatmul.mubr.bf16.gmra.mrb[0].mxu0 %v408
    %v1076 = vpop.f32.mrb[0].mxu0
    %v1077 = vadd.f32 0.0, %v1076
    %v1078 = vpop.f32.mrb[0].mxu0
    %v1079 = vpop.f32.mrb[0].mxu0
    %v1080 = vadd.f32 0.0, %v1079
    %v1081 = vpop.f32.mrb[0].mxu0
    %1082 = vmatprep.mubr.bf16.mxu0 %v417
    %1083 = vmatmul.mubr.bf16.gmra.mrb[0].mxu0 %v409
    %v1084 = vpop.f32.mrb[0].mxu0
    %v1085 = vadd.f32 0.0, %v1084
    %v1086 = vpop.f32.mrb[0].mxu0
    %v1087 = vpop.f32.mrb[0].mxu0
    %v1088 = vadd.f32 0.0, %v1087
    %v1089 = vpop.f32.mrb[0].mxu0
    %1090 = vmatprep.mubr.bf16.mxu0 %v418
    %1091 = vmatmul.mubr.bf16.gmra.mrb[0].mxu0 %v410
    %v1092 = vpop.f32.mrb[0].mxu0
    %v1093 = vadd.f32 0.0, %v1092
    %v1094 = vpop.f32.mrb[0].mxu0
    %v1095 = vpop.f32.mrb[0].mxu0
    %v1096 = vadd.f32 0.0, %v1095
    %v1097 = vpop.f32.mrb[0].mxu0
    %1098 = vdwg.mxu0
    %1099 = vmatprep.subr.bf16.mxu0 0
    %1100 = vmatpush1.bf16.msra.mxu0 %v970
    %1101 = vmatprep.subr.bf16.mxu0 0
    %1102 = vmatpush1.bf16.msra.mxu0 %v971
    %1103 = vmatprep.subr.bf16.mxu0 0
    %1104 = vmatpush1.bf16.msra.mxu0 %v972
    %1105 = vmatprep.subr.bf16.mxu0 0
    %1106 = vmatpush1.bf16.msra.mxu0 %v973
    %1107 = vmatprep.subr.bf16.mxu0 0
    %1108 = vmatpush1.bf16.msra.mxu0 %v974
    %1109 = vmatprep.subr.bf16.mxu0 0
    %1110 = vmatpush1.bf16.msra.mxu0 %v975
    %1111 = vmatprep.subr.bf16.mxu0 0
    %1112 = vmatpush1.bf16.msra.mxu0 %v976
    %1113 = vmatprep.subr.bf16.mxu0 0
    %1114 = vmatpush1.bf16.msra.mxu0 %v977
    %1115 = vmatprep.subr.bf16.mxu0 0
    %1116 = vmatpush1.bf16.msra.mxu0 0
    %1117 = vmatprep.subr.bf16.mxu0 0
    %1118 = vmatpush1.bf16.msra.mxu0 0
    %1119 = vmatprep.subr.bf16.mxu0 0
    %1120 = vmatpush1.bf16.msra.mxu0 0
    %1121 = vmatprep.subr.bf16.mxu0 0
    %1122 = vmatpush1.bf16.msra.mxu0 0
    %1123 = vmatprep.subr.bf16.mxu0 0
    %1124 = vmatpush1.bf16.msra.mxu0 0
    %1125 = vmatprep.subr.bf16.mxu0 0
    %1126 = vmatpush1.bf16.msra.mxu0 0
    %1127 = vmatprep.subr.bf16.mxu0 0
    %1128 = vmatpush1.bf16.msra.mxu0 0
    %1129 = vmatprep.subr.bf16.mxu0 0
    %1130 = vmatpush1.bf16.msra.mxu0 0
    %1131 = vmatprep.mubr.bf16.mxu0 0
    %1132 = vmatmul.mubr.bf16.gmra.mrb[0].mxu0 %v419
    %v1133 = vpop.f32.mrb[0].mxu0
    %v1134 = vadd.f32 %v1037, %v1133
    %v1135 = vpop.f32.mrb[0].mxu0
    %v1136 = vpop.f32.mrb[0].mxu0
    %v1137 = vadd.f32 %v1040, %v1136
    %v1138 = vpop.f32.mrb[0].mxu0
    %1139 = vmatprep.mubr.bf16.mxu0 0
    %1140 = vmatmul.mubr.bf16.gmra.mrb[0].mxu0 %v420
    %v1141 = vpop.f32.mrb[0].mxu0
    %v1142 = vadd.f32 %v1045, %v1141
    %v1143 = vpop.f32.mrb[0].mxu0
    %v1144 = vpop.f32.mrb[0].mxu0
    %v1145 = vadd.f32 %v1048, %v1144
    %v1146 = vpop.f32.mrb[0].mxu0
    %1147 = vmatprep.mubr.bf16.mxu0 0
    %1148 = vmatmul.mubr.bf16.gmra.mrb[0].mxu0 %v421
    %v1149 = vpop.f32.mrb[0].mxu0
    %v1150 = vadd.f32 %v1053, %v1149
    %v1151 = vpop.f32.mrb[0].mxu0
    %v1152 = vpop.f32.mrb[0].mxu0
    %v1153 = vadd.f32 %v1056, %v1152
    %v1154 = vpop.f32.mrb[0].mxu0
    %1155 = vmatprep.mubr.bf16.mxu0 0
    %1156 = vmatmul.mubr.bf16.gmra.mrb[0].mxu0 %v422
    %v1157 = vpop.f32.mrb[0].mxu0
    %v1158 = vadd.f32 %v1061, %v1157
    %v1159 = vpop.f32.mrb[0].mxu0
    %v1160 = vpop.f32.mrb[0].mxu0
    %v1161 = vadd.f32 %v1064, %v1160
    %v1162 = vpop.f32.mrb[0].mxu0
    %1163 = vmatprep.mubr.bf16.mxu0 0
    %1164 = vmatmul.mubr.bf16.gmra.mrb[0].mxu0 %v423
    %v1165 = vpop.f32.mrb[0].mxu0
    %v1166 = vadd.f32 %v1069, %v1165
    %v1167 = vpop.f32.mrb[0].mxu0
    %v1168 = vpop.f32.mrb[0].mxu0
    %v1169 = vadd.f32 %v1072, %v1168
    %v1170 = vpop.f32.mrb[0].mxu0
    %1171 = vmatprep.mubr.bf16.mxu0 0
    %1172 = vmatmul.mubr.bf16.gmra.mrb[0].mxu0 %v424
    %v1173 = vpop.f32.mrb[0].mxu0
    %v1174 = vadd.f32 %v1077, %v1173
    %v1175 = vpop.f32.mrb[0].mxu0
    %v1176 = vpop.f32.mrb[0].mxu0
    %v1177 = vadd.f32 %v1080, %v1176
    %v1178 = vpop.f32.mrb[0].mxu0
    %1179 = vmatprep.mubr.bf16.mxu0 0
    %1180 = vmatmul.mubr.bf16.gmra.mrb[0].mxu0 %v425
    %v1181 = vpop.f32.mrb[0].mxu0
    %v1182 = vadd.f32 %v1085, %v1181
    %v1183 = vpop.f32.mrb[0].mxu0
    %v1184 = vpop.f32.mrb[0].mxu0
    %v1185 = vadd.f32 %v1088, %v1184
    %v1186 = vpop.f32.mrb[0].mxu0
    %1187 = vmatprep.mubr.bf16.mxu0 0
    %1188 = vmatmul.mubr.bf16.gmra.mrb[0].mxu0 %v426
    %v1189 = vpop.f32.mrb[0].mxu0
    %v1190 = vadd.f32 %v1093, %v1189
    %v1191 = vpop.f32.mrb[0].mxu0
    %v1192 = vpop.f32.mrb[0].mxu0
    %v1193 = vadd.f32 %v1096, %v1192
    %v1194 = vpop.f32.mrb[0].mxu0
    %1195 = vdwg.mxu0
    %s1196 = scalar_lea.vmem [#allocation7], 384
    %v1197 = vld [vmem:[%s1196] sm:$0xf]
    %v1198 = vld [vmem:[%s1196 + $0x4] sm:$0xf]
    %v1199 = vld [vmem:[%s1196 + $0x8] sm:$0xf]
    %v1200 = vld [vmem:[%s1196 + $0xc] sm:$0xf]
    %v1201 = vld [vmem:[%s1196 + $0x10] sm:$0xf]
    %v1202 = vld [vmem:[%s1196 + $0x14] sm:$0xf]
    %v1203 = vld [vmem:[%s1196 + $0x18] sm:$0xf]
    %v1204 = vld [vmem:[%s1196 + $0x1c] sm:$0xf]
    %v1205 = vld [vmem:[%s1196 + $0x20] sm:$0xf]
    %v1206 = vld [vmem:[%s1196 + $0x24] sm:$0xf]
    %v1207 = vld [vmem:[%s1196 + $0x28] sm:$0xf]
    %v1208 = vld [vmem:[%s1196 + $0x2c] sm:$0xf]
    %v1209 = vld [vmem:[%s1196 + $0x30] sm:$0xf]
    %v1210 = vld [vmem:[%s1196 + $0x34] sm:$0xf]
    %v1211 = vld [vmem:[%s1196 + $0x38] sm:$0xf]
    %v1212 = vld [vmem:[%s1196 + $0x3c] sm:$0xf]
    %v1213 = vld [vmem:[%s1196 + $0x40] sm:$0xf]
    %v1214 = vld [vmem:[%s1196 + $0x44] sm:$0xf]
    %v1215 = vld [vmem:[%s1196 + $0x48] sm:$0xf]
    %v1216 = vld [vmem:[%s1196 + $0x4c] sm:$0xf]
    %v1217 = vld [vmem:[%s1196 + $0x50] sm:$0xf]
    %v1218 = vld [vmem:[%s1196 + $0x54] sm:$0xf]
    %v1219 = vld [vmem:[%s1196 + $0x58] sm:$0xf]
    %v1220 = vld [vmem:[%s1196 + $0x5c] sm:$0xf]
    %v1221 = vld [vmem:[%s1196 + $0x60] sm:$0xf]
    %v1222 = vld [vmem:[%s1196 + $0x64] sm:$0xf]
    %v1223 = vld [vmem:[%s1196 + $0x68] sm:$0xf]
    %v1224 = vld [vmem:[%s1196 + $0x6c] sm:$0xf]
    %v1225 = vld [vmem:[%s1196 + $0x70] sm:$0xf]
    %v1226 = vld [vmem:[%s1196 + $0x74] sm:$0xf]
    %v1227 = vld [vmem:[%s1196 + $0x78] sm:$0xf]
    %v1228 = vld [vmem:[%s1196 + $0x7c] sm:$0xf]
    %v1229 = vld [vmem:[%s1196 + $0x80] sm:$0xf]
    %v1230 = vld [vmem:[%s1196 + $0x84] sm:$0xf]
    %v1231 = vld [vmem:[%s1196 + $0x88] sm:$0xf]
    %v1232 = vld [vmem:[%s1196 + $0x8c] sm:$0xf]
    %v1233 = vld [vmem:[%s1196 + $0x90] sm:$0xf]
    %v1234 = vld [vmem:[%s1196 + $0x94] sm:$0xf]
    %v1235 = vld [vmem:[%s1196 + $0x98] sm:$0xf]
    %v1236 = vld [vmem:[%s1196 + $0x9c] sm:$0xf]
    %v1237 = vld [vmem:[%s1196 + $0xa0] sm:$0xf]
    %v1238 = vld [vmem:[%s1196 + $0xa4] sm:$0xf]
    %v1239 = vld [vmem:[%s1196 + $0xa8] sm:$0xf]
    %v1240 = vld [vmem:[%s1196 + $0xac] sm:$0xf]
    %v1241 = vld [vmem:[%s1196 + $0xb0] sm:$0xf]
    %v1242 = vld [vmem:[%s1196 + $0xb4] sm:$0xf]
    %v1243 = vld [vmem:[%s1196 + $0xb8] sm:$0xf]
    %v1244 = vld [vmem:[%s1196 + $0xbc] sm:$0xf]
    %v1293 = vunpack.c.l.b16 %v1197
    %v1294 = vunpack.c.l.b16 %v1198
    %v1295 = vunpack.c.l.b16 %v1199
    %v1296 = vunpack.c.l.b16 %v1200
    %v1297 = vunpack.c.l.b16 %v1201
    %v1298 = vunpack.c.l.b16 %v1202
    %v1299 = vunpack.c.l.b16 %v1203
    %v1300 = vunpack.c.l.b16 %v1204
    %v1301 = vunpack.c.l.b16 %v1205
    %v1302 = vunpack.c.l.b16 %v1206
    %v1303 = vunpack.c.l.b16 %v1207
    %v1304 = vunpack.c.l.b16 %v1208
    %v1305 = vunpack.c.l.b16 %v1209
    %v1306 = vunpack.c.l.b16 %v1210
    %v1307 = vunpack.c.l.b16 %v1211
    %v1308 = vunpack.c.l.b16 %v1212
    %v1309 = vunpack.c.l.b16 %v1213
    %v1310 = vunpack.c.l.b16 %v1214
    %v1311 = vunpack.c.l.b16 %v1215
    %v1312 = vunpack.c.l.b16 %v1216
    %v1313 = vunpack.c.l.b16 %v1217
    %v1314 = vunpack.c.l.b16 %v1218
    %v1315 = vunpack.c.l.b16 %v1219
    %v1316 = vunpack.c.l.b16 %v1220
    %v1317 = vunpack.c.l.b16 %v1221
    %v1318 = vunpack.c.l.b16 %v1222
    %v1319 = vunpack.c.l.b16 %v1223
    %v1320 = vunpack.c.l.b16 %v1224
    %v1321 = vunpack.c.l.b16 %v1225
    %v1322 = vunpack.c.l.b16 %v1226
    %v1323 = vunpack.c.l.b16 %v1227
    %v1324 = vunpack.c.l.b16 %v1228
    %v1325 = vunpack.c.l.b16 %v1229
    %v1326 = vunpack.c.l.b16 %v1230
    %v1327 = vunpack.c.l.b16 %v1231
    %v1328 = vunpack.c.l.b16 %v1232
    %v1329 = vunpack.c.l.b16 %v1233
    %v1330 = vunpack.c.l.b16 %v1234
    %v1331 = vunpack.c.l.b16 %v1235
    %v1332 = vunpack.c.l.b16 %v1236
    %v1333 = vunpack.c.l.b16 %v1237
    %v1334 = vunpack.c.l.b16 %v1238
    %v1335 = vunpack.c.l.b16 %v1239
    %v1336 = vunpack.c.l.b16 %v1240
    %v1337 = vunpack.c.l.b16 %v1241
    %v1338 = vunpack.c.l.b16 %v1242
    %v1339 = vunpack.c.l.b16 %v1243
    %v1340 = vunpack.c.l.b16 %v1244
    %v1341 = vpack.c.b16 %v1294, %v1293
    %v1342 = vpack.c.b16 %v1296, %v1295
    %v1343 = vpack.c.b16 %v1298, %v1297
    %v1344 = vpack.c.b16 %v1300, %v1299
    %v1345 = vpack.c.b16 %v1302, %v1301
    %v1346 = vpack.c.b16 %v1304, %v1303
    %v1347 = vpack.c.b16 %v1306, %v1305
    %v1348 = vpack.c.b16 %v1308, %v1307
    %v1349 = vpack.c.b16 %v1310, %v1309
    %v1350 = vpack.c.b16 %v1312, %v1311
    %v1351 = vpack.c.b16 %v1314, %v1313
    %v1352 = vpack.c.b16 %v1316, %v1315
    %v1353 = vpack.c.b16 %v1318, %v1317
    %v1354 = vpack.c.b16 %v1320, %v1319
    %v1355 = vpack.c.b16 %v1322, %v1321
    %v1356 = vpack.c.b16 %v1324, %v1323
    %v1357 = vpack.c.b16 %v1326, %v1325
    %v1358 = vpack.c.b16 %v1328, %v1327
    %v1359 = vpack.c.b16 %v1330, %v1329
    %v1360 = vpack.c.b16 %v1332, %v1331
    %v1361 = vpack.c.b16 %v1334, %v1333
    %v1362 = vpack.c.b16 %v1336, %v1335
    %v1363 = vpack.c.b16 %v1338, %v1337
    %v1364 = vpack.c.b16 %v1340, %v1339
    %1389 = vmatprep.subr.bf16.mxu0 0
    %1390 = vmatpush1.bf16.msra.mxu0 %v1341
    %1391 = vmatprep.subr.bf16.mxu0 0
    %1392 = vmatpush1.bf16.msra.mxu0 %v1342
    %1393 = vmatprep.subr.bf16.mxu0 0
    %1394 = vmatpush1.bf16.msra.mxu0 %v1343
    %1395 = vmatprep.subr.bf16.mxu0 0
    %1396 = vmatpush1.bf16.msra.mxu0 %v1344
    %1397 = vmatprep.subr.bf16.mxu0 0
    %1398 = vmatpush1.bf16.msra.mxu0 %v1345
    %1399 = vmatprep.subr.bf16.mxu0 0
    %1400 = vmatpush1.bf16.msra.mxu0 %v1346
    %1401 = vmatprep.subr.bf16.mxu0 0
    %1402 = vmatpush1.bf16.msra.mxu0 %v1347
    %1403 = vmatprep.subr.bf16.mxu0 0
    %1404 = vmatpush1.bf16.msra.mxu0 %v1348
    %1405 = vmatprep.subr.bf16.mxu0 0
    %1406 = vmatpush1.bf16.msra.mxu0 %v1349
    %1407 = vmatprep.subr.bf16.mxu0 0
    %1408 = vmatpush1.bf16.msra.mxu0 %v1350
    %1409 = vmatprep.subr.bf16.mxu0 0
    %1410 = vmatpush1.bf16.msra.mxu0 %v1351
    %1411 = vmatprep.subr.bf16.mxu0 0
    %1412 = vmatpush1.bf16.msra.mxu0 %v1352
    %1413 = vmatprep.subr.bf16.mxu0 0
    %1414 = vmatpush1.bf16.msra.mxu0 %v1353
    %1415 = vmatprep.subr.bf16.mxu0 0
    %1416 = vmatpush1.bf16.msra.mxu0 %v1354
    %1417 = vmatprep.subr.bf16.mxu0 0
    %1418 = vmatpush1.bf16.msra.mxu0 %v1355
    %1419 = vmatprep.subr.bf16.mxu0 0
    %1420 = vmatpush1.bf16.msra.mxu0 %v1356
    %1421 = vmatprep.mubr.bf16.mxu0 %v411
    %1422 = vmatmul.mubr.bf16.gmra.mrb[0].mxu0 %v403
    %v1423 = vpop.f32.mrb[0].mxu0
    %v1424 = vpop.f32.mrb[0].mxu0
    %v1425 = vpop.f32.mrb[0].mxu0
    %v1426 = vadd.f32 0.0, %v1425
    %v1427 = vpop.f32.mrb[0].mxu0
    %1428 = vmatprep.mubr.bf16.mxu0 %v412
    %1429 = vmatmul.mubr.bf16.gmra.mrb[0].mxu0 %v404
    %v1430 = vpop.f32.mrb[0].mxu0
    %v1431 = vadd.f32 0.0, %v1430
    %v1432 = vpop.f32.mrb[0].mxu0
    %v1433 = vpop.f32.mrb[0].mxu0
    %v1434 = vadd.f32 0.0, %v1433
    %v1435 = vpop.f32.mrb[0].mxu0
    %1436 = vmatprep.mubr.bf16.mxu0 %v413
    %1437 = vmatmul.mubr.bf16.gmra.mrb[0].mxu0 %v405
    %v1438 = vpop.f32.mrb[0].mxu0
    %v1439 = vadd.f32 0.0, %v1438
    %v1440 = vpop.f32.mrb[0].mxu0
    %v1441 = vpop.f32.mrb[0].mxu0
    %v1442 = vadd.f32 0.0, %v1441
    %v1443 = vpop.f32.mrb[0].mxu0
    %1444 = vmatprep.mubr.bf16.mxu0 %v414
    %1445 = vmatmul.mubr.bf16.gmra.mrb[0].mxu0 %v406
    %v1446 = vpop.f32.mrb[0].mxu0
    %v1447 = vadd.f32 0.0, %v1446
    %v1448 = vpop.f32.mrb[0].mxu0
    %v1449 = vpop.f32.mrb[0].mxu0
    %v1450 = vadd.f32 0.0, %v1449
    %v1451 = vpop.f32.mrb[0].mxu0
    %1452 = vmatprep.mubr.bf16.mxu0 %v415
    %1453 = vmatmul.mubr.bf16.gmra.mrb[0].mxu0 %v407
    %v1454 = vpop.f32.mrb[0].mxu0
    %v1455 = vpop.f32.mrb[0].mxu0
    %v1456 = vpop.f32.mrb[0].mxu0
    %v1457 = vadd.f32 0.0, %v1456
    %v1458 = vpop.f32.mrb[0].mxu0
    %1459 = vmatprep.mubr.bf16.mxu0 %v416
    %1460 = vmatmul.mubr.bf16.gmra.mrb[0].mxu0 %v408
    %v1461 = vpop.f32.mrb[0].mxu0
    %v1462 = vadd.f32 0.0, %v1461
    %v1463 = vpop.f32.mrb[0].mxu0
    %v1464 = vpop.f32.mrb[0].mxu0
    %v1465 = vadd.f32 0.0, %v1464
    %v1466 = vpop.f32.mrb[0].mxu0
    %1467 = vmatprep.mubr.bf16.mxu0 %v417
    %1468 = vmatmul.mubr.bf16.gmra.mrb[0].mxu0 %v409
    %v1469 = vpop.f32.mrb[0].mxu0
    %v1470 = vadd.f32 0.0, %v1469
    %v1471 = vpop.f32.mrb[0].mxu0
    %v1472 = vpop.f32.mrb[0].mxu0
    %v1473 = vadd.f32 0.0, %v1472
    %v1474 = vpop.f32.mrb[0].mxu0
    %1475 = vmatprep.mubr.bf16.mxu0 %v418
    %1476 = vmatmul.mubr.bf16.gmra.mrb[0].mxu0 %v410
    %v1477 = vpop.f32.mrb[0].mxu0
    %v1478 = vadd.f32 0.0, %v1477
    %v1479 = vpop.f32.mrb[0].mxu0
    %v1480 = vpop.f32.mrb[0].mxu0
    %v1481 = vadd.f32 0.0, %v1480
    %v1482 = vpop.f32.mrb[0].mxu0
    %1483 = vdwg.mxu0
    %1484 = vmatprep.subr.bf16.mxu0 0
    %1485 = vmatpush1.bf16.msra.mxu0 %v1357
    %1486 = vmatprep.subr.bf16.mxu0 0
    %1487 = vmatpush1.bf16.msra.mxu0 %v1358
    %1488 = vmatprep.subr.bf16.mxu0 0
    %1489 = vmatpush1.bf16.msra.mxu0 %v1359
    %1490 = vmatprep.subr.bf16.mxu0 0
    %1491 = vmatpush1.bf16.msra.mxu0 %v1360
    %1492 = vmatprep.subr.bf16.mxu0 0
    %1493 = vmatpush1.bf16.msra.mxu0 %v1361
    %1494 = vmatprep.subr.bf16.mxu0 0
    %1495 = vmatpush1.bf16.msra.mxu0 %v1362
    %1496 = vmatprep.subr.bf16.mxu0 0
    %1497 = vmatpush1.bf16.msra.mxu0 %v1363
    %1498 = vmatprep.subr.bf16.mxu0 0
    %1499 = vmatpush1.bf16.msra.mxu0 %v1364
    %1500 = vmatprep.subr.bf16.mxu0 0
    %1501 = vmatpush1.bf16.msra.mxu0 0
    %1502 = vmatprep.subr.bf16.mxu0 0
    %1503 = vmatpush1.bf16.msra.mxu0 0
    %1504 = vmatprep.subr.bf16.mxu0 0
    %1505 = vmatpush1.bf16.msra.mxu0 0
    %1506 = vmatprep.subr.bf16.mxu0 0
    %1507 = vmatpush1.bf16.msra.mxu0 0
    %1508 = vmatprep.subr.bf16.mxu0 0
    %1509 = vmatpush1.bf16.msra.mxu0 0
    %1510 = vmatprep.subr.bf16.mxu0 0
    %1511 = vmatpush1.bf16.msra.mxu0 0
    %1512 = vmatprep.subr.bf16.mxu0 0
    %1513 = vmatpush1.bf16.msra.mxu0 0
    %1514 = vmatprep.subr.bf16.mxu0 0
    %1515 = vmatpush1.bf16.msra.mxu0 0
    %1516 = vmatprep.mubr.bf16.mxu0 0
    %1517 = vmatmul.mubr.bf16.gmra.mrb[0].mxu0 %v419
    %v1518 = vpop.f32.mrb[0].mxu0
    %v1519 = vpop.f32.mrb[0].mxu0
    %v1520 = vpop.f32.mrb[0].mxu0
    %v1521 = vadd.f32 %v1426, %v1520
    %v1522 = vpop.f32.mrb[0].mxu0
    %1523 = vmatprep.mubr.bf16.mxu0 0
    %1524 = vmatmul.mubr.bf16.gmra.mrb[0].mxu0 %v420
    %v1525 = vpop.f32.mrb[0].mxu0
    %v1526 = vadd.f32 %v1431, %v1525
    %v1527 = vpop.f32.mrb[0].mxu0
    %v1528 = vpop.f32.mrb[0].mxu0
    %v1529 = vadd.f32 %v1434, %v1528
    %v1530 = vpop.f32.mrb[0].mxu0
    %1531 = vmatprep.mubr.bf16.mxu0 0
    %1532 = vmatmul.mubr.bf16.gmra.mrb[0].mxu0 %v421
    %v1533 = vpop.f32.mrb[0].mxu0
    %v1534 = vadd.f32 %v1439, %v1533
    %v1535 = vpop.f32.mrb[0].mxu0
    %v1536 = vpop.f32.mrb[0].mxu0
    %v1537 = vadd.f32 %v1442, %v1536
    %v1538 = vpop.f32.mrb[0].mxu0
    %1539 = vmatprep.mubr.bf16.mxu0 0
    %1540 = vmatmul.mubr.bf16.gmra.mrb[0].mxu0 %v422
    %v1541 = vpop.f32.mrb[0].mxu0
    %v1542 = vadd.f32 %v1447, %v1541
    %v1543 = vpop.f32.mrb[0].mxu0
    %v1544 = vpop.f32.mrb[0].mxu0
    %v1545 = vadd.f32 %v1450, %v1544
    %v1546 = vpop.f32.mrb[0].mxu0
    %1547 = vmatprep.mubr.bf16.mxu0 0
    %1548 = vmatmul.mubr.bf16.gmra.mrb[0].mxu0 %v423
    %v1549 = vpop.f32.mrb[0].mxu0
    %v1550 = vpop.f32.mrb[0].mxu0
    %v1551 = vpop.f32.mrb[0].mxu0
    %v1552 = vadd.f32 %v1457, %v1551
    %v1553 = vpop.f32.mrb[0].mxu0
    %1554 = vmatprep.mubr.bf16.mxu0 0
    %1555 = vmatmul.mubr.bf16.gmra.mrb[0].mxu0 %v424
    %v1556 = vpop.f32.mrb[0].mxu0
    %v1557 = vadd.f32 %v1462, %v1556
    %v1558 = vpop.f32.mrb[0].mxu0
    %v1559 = vpop.f32.mrb[0].mxu0
    %v1560 = vadd.f32 %v1465, %v1559
    %v1561 = vpop.f32.mrb[0].mxu0
    %1562 = vmatprep.mubr.bf16.mxu0 0
    %1563 = vmatmul.mubr.bf16.gmra.mrb[0].mxu0 %v425
    %v1564 = vpop.f32.mrb[0].mxu0
    %v1565 = vadd.f32 %v1470, %v1564
    %v1566 = vpop.f32.mrb[0].mxu0
    %v1567 = vpop.f32.mrb[0].mxu0
    %v1568 = vadd.f32 %v1473, %v1567
    %v1569 = vpop.f32.mrb[0].mxu0
    %1570 = vmatprep.mubr.bf16.mxu0 0
    %1571 = vmatmul.mubr.bf16.gmra.mrb[0].mxu0 %v426
    %v1572 = vpop.f32.mrb[0].mxu0
    %v1573 = vadd.f32 %v1478, %v1572
    %v1574 = vpop.f32.mrb[0].mxu0
    %v1575 = vpop.f32.mrb[0].mxu0
    %v1576 = vadd.f32 %v1481, %v1575
    %v1577 = vpop.f32.mrb[0].mxu0
    %1578 = vdwg.mxu0
    %v1579 = vadd.f32 %v1134, 0.0
    %v1580 = vadd.f32 %v749, %v1137
    %v1581 = vadd.f32 %v752, %v1142
    %v1582 = vadd.f32 %v757, %v1145
    %v1583 = vadd.f32 %v760, %v1150
    %v1584 = vadd.f32 %v765, %v1153
    %v1585 = vadd.f32 %v768, %v1158
    %v1586 = vadd.f32 %v773, %v1161
    %v1587 = vadd.f32 %v1166, 0.0
    %v1588 = vadd.f32 %v780, %v1169
    %v1589 = vadd.f32 %v783, %v1174
    %v1590 = vadd.f32 %v788, %v1177
    %v1591 = vadd.f32 %v791, %v1182
    %v1592 = vadd.f32 %v796, %v1185
    %v1593 = vadd.f32 %v799, %v1190
    %v1594 = vadd.f32 %v804, %v1193
    %v1595 = vadd.f32 %v1579, %v1521
    %v1596 = vadd.f32 %v1580, %v1526
    %v1597 = vadd.f32 %v1581, %v1529
    %v1598 = vadd.f32 %v1582, %v1534
    %v1599 = vadd.f32 %v1583, %v1537
    %v1600 = vadd.f32 %v1584, %v1542
    %v1601 = vadd.f32 %v1585, %v1545
    %v1602 = vadd.f32 %v1586, 0.0
    %v1603 = vadd.f32 %v1587, %v1552
    %v1604 = vadd.f32 %v1588, %v1557
    %v1605 = vadd.f32 %v1589, %v1560
    %v1606 = vadd.f32 %v1590, %v1565
    %v1607 = vadd.f32 %v1591, %v1568
    %v1608 = vadd.f32 %v1592, %v1573
    %v1609 = vadd.f32 %v1593, %v1576
    %v1610 = vadd.f32 %v1594, 0.0
    %v1611 = vld [vmem:[%s4] sm:$0x1]
    %v1613 = vlaneseq
    %v1614 = vshrl.u32 %v1613, 7
    %v1615 = vsub.s32 0, %v1614
    %v1616 = vrot.slane %v1611, %v1615
    %v1618 = vadd.f32 %v1595, %v1616
    %v1619 = vadd.f32 %v1596, %v1616
    %v1620 = vadd.f32 %v1597, %v1616
    %v1621 = vadd.f32 %v1598, %v1616
    %v1622 = vadd.f32 %v1599, %v1616
    %v1623 = vadd.f32 %v1600, %v1616
    %v1624 = vadd.f32 %v1601, %v1616
    %v1625 = vadd.f32 %v1602, %v1616
    %v1626 = vadd.f32 %v1603, %v1616
    %v1627 = vadd.f32 %v1604, %v1616
    %v1628 = vadd.f32 %v1605, %v1616
    %v1629 = vadd.f32 %v1606, %v1616
    %v1630 = vadd.f32 %v1607, %v1616
    %v1631 = vadd.f32 %v1608, %v1616
    %v1632 = vadd.f32 %v1609, %v1616
    %v1633 = vadd.f32 %v1610, %v1616
    %v1634 = vmax.f32 %v1618, 0.0
    %v1635 = vmax.f32 %v1619, 0.0
    %v1636 = vmax.f32 %v1620, 0.0
    %v1637 = vmax.f32 %v1621, 0.0
    %v1638 = vmax.f32 %v1622, 0.0
    %v1639 = vmax.f32 %v1623, 0.0
    %v1640 = vmax.f32 %v1624, 0.0
    %v1641 = vmax.f32 %v1625, 0.0
    %v1642 = vmax.f32 %v1626, 0.0
    %v1643 = vmax.f32 %v1627, 0.0
    %v1644 = vmax.f32 %v1628, 0.0
    %v1645 = vmax.f32 %v1629, 0.0
    %v1646 = vmax.f32 %v1630, 0.0
    %v1647 = vmax.f32 %v1631, 0.0
    %v1648 = vmax.f32 %v1632, 0.0
    %v1649 = vmax.f32 %v1633, 0.0
    %v1650 = vpack.c.bf16 %v1635, %v1634
    %v1651 = vpack.c.bf16 %v1637, %v1636
    %v1652 = vpack.c.bf16 %v1639, %v1638
    %v1653 = vpack.c.bf16 %v1641, %v1640
    %v1654 = vpack.c.bf16 %v1643, %v1642
    %v1655 = vpack.c.bf16 %v1645, %v1644
    %v1656 = vpack.c.bf16 %v1647, %v1646
    %v1657 = vpack.c.bf16 %v1649, %v1648
    %v1658 = vld [vmem:[#allocation8] sm:$0xf]
    %v1659 = vld [vmem:[#allocation8 + $0x4] sm:$0xf]
    %v1660 = vld [vmem:[#allocation8 + $0x8] sm:$0xf]
    %v1661 = vld [vmem:[#allocation8 + $0xc] sm:$0xf]
    %v1662 = vld [vmem:[#allocation8 + $0x10] sm:$0xf]
    %v1663 = vld [vmem:[#allocation8 + $0x14] sm:$0xf]
    %v1664 = vld [vmem:[#allocation8 + $0x18] sm:$0xf]
    %v1665 = vld [vmem:[#allocation8 + $0x1c] sm:$0xf]
    %v1666 = vld [vmem:[#allocation8 + $0x20] sm:$0xf]
    %v1667 = vld [vmem:[#allocation8 + $0x24] sm:$0xf]
    %v1668 = vld [vmem:[#allocation8 + $0x28] sm:$0xf]
    %v1669 = vld [vmem:[#allocation8 + $0x2c] sm:$0xf]
    %v1670 = vld [vmem:[#allocation8 + $0x30] sm:$0xf]
    %v1671 = vld [vmem:[#allocation8 + $0x34] sm:$0xf]
    %v1672 = vld [vmem:[#allocation8 + $0x38] sm:$0xf]
    %v1673 = vld [vmem:[#allocation8 + $0x3c] sm:$0xf]
    %v1674 = vld [vmem:[%s6] sm:$0x1]
    %v1676 = vlaneseq
    %v1677 = vshrl.u32 %v1676, 7
    %v1678 = vsub.s32 0, %v1677
    %v1679 = vrot.slane %v1674, %v1678
    %v1697 = vunpack.c.l.b16 %v1658
    %v1698 = vunpack.c.l.b16 %v1659
    %v1699 = vunpack.c.l.b16 %v1660
    %v1700 = vunpack.c.l.b16 %v1661
    %v1701 = vunpack.c.l.b16 %v1662
    %v1702 = vunpack.c.l.b16 %v1663
    %v1703 = vunpack.c.l.b16 %v1664
    %v1704 = vunpack.c.l.b16 %v1665
    %v1705 = vunpack.c.l.b16 %v1666
    %v1706 = vunpack.c.l.b16 %v1667
    %v1707 = vunpack.c.l.b16 %v1668
    %v1708 = vunpack.c.l.b16 %v1669
    %v1709 = vunpack.c.l.b16 %v1670
    %v1710 = vunpack.c.l.b16 %v1671
    %v1711 = vunpack.c.l.b16 %v1672
    %v1712 = vunpack.c.l.b16 %v1673
    %v1713 = vpack.c.b16 %v1698, %v1697
    %v1714 = vpack.c.b16 %v1700, %v1699
    %v1715 = vpack.c.b16 %v1702, %v1701
    %v1716 = vpack.c.b16 %v1704, %v1703
    %v1717 = vpack.c.b16 %v1706, %v1705
    %v1718 = vpack.c.b16 %v1708, %v1707
    %v1719 = vpack.c.b16 %v1710, %v1709
    %v1720 = vpack.c.b16 %v1712, %v1711
    %1729 = vmatprep.subr.bf16.mxu0 0
    %1730 = vmatpush1.bf16.msra.mxu0 %v1713
    %1731 = vmatprep.subr.bf16.mxu0 0
    %1732 = vmatpush1.bf16.msra.mxu0 %v1714
    %1733 = vmatprep.subr.bf16.mxu0 0
    %1734 = vmatpush1.bf16.msra.mxu0 %v1715
    %1735 = vmatprep.subr.bf16.mxu0 0
    %1736 = vmatpush1.bf16.msra.mxu0 %v1716
    %1737 = vmatprep.subr.bf16.mxu0 0
    %1738 = vmatpush1.bf16.msra.mxu0 %v1717
    %1739 = vmatprep.subr.bf16.mxu0 0
    %1740 = vmatpush1.bf16.msra.mxu0 %v1718
    %1741 = vmatprep.subr.bf16.mxu0 0
    %1742 = vmatpush1.bf16.msra.mxu0 %v1719
    %1743 = vmatprep.subr.bf16.mxu0 0
    %1744 = vmatpush1.bf16.msra.mxu0 %v1720
    %1745 = vmatprep.subr.bf16.mxu0 0
    %1746 = vmatpush1.bf16.msra.mxu0 0
    %1747 = vmatprep.subr.bf16.mxu0 0
    %1748 = vmatpush1.bf16.msra.mxu0 0
    %1749 = vmatprep.subr.bf16.mxu0 0
    %1750 = vmatpush1.bf16.msra.mxu0 0
    %1751 = vmatprep.subr.bf16.mxu0 0
    %1752 = vmatpush1.bf16.msra.mxu0 0
    %1753 = vmatprep.subr.bf16.mxu0 0
    %1754 = vmatpush1.bf16.msra.mxu0 0
    %1755 = vmatprep.subr.bf16.mxu0 0
    %1756 = vmatpush1.bf16.msra.mxu0 0
    %1757 = vmatprep.subr.bf16.mxu0 0
    %1758 = vmatpush1.bf16.msra.mxu0 0
    %1759 = vmatprep.subr.bf16.mxu0 0
    %1760 = vmatpush1.bf16.msra.mxu0 0
    %1761 = vmatprep.mubr.bf16.mxu0 0
    %1762 = vmatmul.mubr.bf16.gmra.mrb[0].mxu0 %v1650
    %v1763 = vpop.f32.mrb[0].mxu0
    %v1764 = vadd.f32 %v1679, %v1763
    %v1765 = vpop.f32.mrb[0].mxu0
    %v1766 = vpop.f32.mrb[0].mxu0
    %v1767 = vadd.f32 %v1679, %v1766
    %v1768 = vpop.f32.mrb[0].mxu0
    %1769 = vmatprep.mubr.bf16.mxu0 0
    %1770 = vmatmul.mubr.bf16.gmra.mrb[0].mxu0 %v1651
    %v1771 = vpop.f32.mrb[0].mxu0
    %v1772 = vadd.f32 %v1679, %v1771
    %v1773 = vpop.f32.mrb[0].mxu0
    %v1774 = vpop.f32.mrb[0].mxu0
    %v1775 = vadd.f32 %v1679, %v1774
    %v1776 = vpop.f32.mrb[0].mxu0
    %1777 = vmatprep.mubr.bf16.mxu0 0
    %1778 = vmatmul.mubr.bf16.gmra.mrb[0].mxu0 %v1652
    %v1779 = vpop.f32.mrb[0].mxu0
    %v1780 = vadd.f32 %v1679, %v1779
    %v1781 = vpop.f32.mrb[0].mxu0
    %v1782 = vpop.f32.mrb[0].mxu0
    %v1783 = vadd.f32 %v1679, %v1782
    %v1784 = vpop.f32.mrb[0].mxu0
    %1785 = vmatprep.mubr.bf16.mxu0 0
    %1786 = vmatmul.mubr.bf16.gmra.mrb[0].mxu0 %v1653
    %v1787 = vpop.f32.mrb[0].mxu0
    %v1788 = vadd.f32 %v1679, %v1787
    %v1789 = vpop.f32.mrb[0].mxu0
    %v1790 = vpop.f32.mrb[0].mxu0
    %v1791 = vadd.f32 %v1679, %v1790
    %v1792 = vpop.f32.mrb[0].mxu0
    %1793 = vmatprep.mubr.bf16.mxu0 0
    %1794 = vmatmul.mubr.bf16.gmra.mrb[0].mxu0 %v1654
    %v1795 = vpop.f32.mrb[0].mxu0
    %v1796 = vadd.f32 %v1679, %v1795
    %v1797 = vpop.f32.mrb[0].mxu0
    %v1798 = vpop.f32.mrb[0].mxu0
    %v1799 = vadd.f32 %v1679, %v1798
    %v1800 = vpop.f32.mrb[0].mxu0
    %1801 = vmatprep.mubr.bf16.mxu0 0
    %1802 = vmatmul.mubr.bf16.gmra.mrb[0].mxu0 %v1655
    %v1803 = vpop.f32.mrb[0].mxu0
    %v1804 = vadd.f32 %v1679, %v1803
    %v1805 = vpop.f32.mrb[0].mxu0
    %v1806 = vpop.f32.mrb[0].mxu0
    %v1807 = vadd.f32 %v1679, %v1806
    %v1808 = vpop.f32.mrb[0].mxu0
    %1809 = vmatprep.mubr.bf16.mxu0 0
    %1810 = vmatmul.mubr.bf16.gmra.mrb[0].mxu0 %v1656
    %v1811 = vpop.f32.mrb[0].mxu0
    %v1812 = vadd.f32 %v1679, %v1811
    %v1813 = vpop.f32.mrb[0].mxu0
    %v1814 = vpop.f32.mrb[0].mxu0
    %v1815 = vadd.f32 %v1679, %v1814
    %v1816 = vpop.f32.mrb[0].mxu0
    %1817 = vmatprep.mubr.bf16.mxu0 0
    %1818 = vmatmul.mubr.bf16.gmra.mrb[0].mxu0 %v1657
    %v1819 = vpop.f32.mrb[0].mxu0
    %v1820 = vadd.f32 %v1679, %v1819
    %v1821 = vpop.f32.mrb[0].mxu0
    %v1822 = vpop.f32.mrb[0].mxu0
    %v1823 = vadd.f32 %v1679, %v1822
    %v1824 = vpop.f32.mrb[0].mxu0
    %1825 = vdwg.mxu0
    %v1826 = vunpack.c.l.bf16 %v83
    %v1827 = vunpack.c.l.bf16 %v84
    %v1828 = vunpack.c.l.bf16 %v85
    %v1829 = vunpack.c.l.bf16 %v86
    %v1830 = vunpack.c.l.bf16 %v87
    %v1831 = vunpack.c.l.bf16 %v88
    %v1832 = vunpack.c.l.bf16 %v89
    %v1833 = vunpack.c.l.bf16 %v90
    %v1834 = vunpack.c.l.bf16 %v91
    %v1835 = vunpack.c.l.bf16 %v92
    %v1836 = vunpack.c.l.bf16 %v93
    %v1837 = vunpack.c.l.bf16 %v94
    %v1838 = vunpack.c.l.bf16 %v95
    %v1839 = vunpack.c.l.bf16 %v96
    %v1840 = vunpack.c.l.bf16 %v97
    %v1841 = vunpack.c.l.bf16 %v98
    %v1842 = vadd.f32 %v1764, %v1826
    %v1843 = vadd.f32 %v1767, %v1827
    %v1844 = vadd.f32 %v1772, %v1828
    %v1845 = vadd.f32 %v1775, %v1829
    %v1846 = vadd.f32 %v1780, %v1830
    %v1847 = vadd.f32 %v1783, %v1831
    %v1848 = vadd.f32 %v1788, %v1832
    %v1849 = vadd.f32 %v1791, %v1833
    %v1850 = vadd.f32 %v1796, %v1834
    %v1851 = vadd.f32 %v1799, %v1835
    %v1852 = vadd.f32 %v1804, %v1836
    %v1853 = vadd.f32 %v1807, %v1837
    %v1854 = vadd.f32 %v1812, %v1838
    %v1855 = vadd.f32 %v1815, %v1839
    %v1856 = vadd.f32 %v1820, %v1840
    %v1857 = vadd.f32 %v1823, %v1841
    %v1858 = vmax.f32 %v1842, 0.0
    %v1859 = vmax.f32 %v1843, 0.0
    %v1860 = vmax.f32 %v1844, 0.0
    %v1861 = vmax.f32 %v1845, 0.0
    %v1862 = vmax.f32 %v1846, 0.0
    %v1863 = vmax.f32 %v1847, 0.0
    %v1864 = vmax.f32 %v1848, 0.0
    %v1865 = vmax.f32 %v1849, 0.0
    %v1866 = vmax.f32 %v1850, 0.0
    %v1867 = vmax.f32 %v1851, 0.0
    %v1868 = vmax.f32 %v1852, 0.0
    %v1869 = vmax.f32 %v1853, 0.0
    %v1870 = vmax.f32 %v1854, 0.0
    %v1871 = vmax.f32 %v1855, 0.0
    %v1872 = vmax.f32 %v1856, 0.0
    %v1873 = vmax.f32 %v1857, 0.0
    %v1874 = vpack.c.bf16 %v1859, %v1858
    %v1875 = vpack.c.bf16 %v1861, %v1860
    %v1876 = vpack.c.bf16 %v1863, %v1862
    %v1877 = vpack.c.bf16 %v1865, %v1864
    %v1878 = vpack.c.bf16 %v1867, %v1866
    %v1879 = vpack.c.bf16 %v1869, %v1868
    %v1880 = vpack.c.bf16 %v1871, %v1870
    %v1881 = vpack.c.bf16 %v1873, %v1872
    %v1890 = vunpack.c.l.b16 %v1874
    %v1891 = vunpack.c.h.b16 %v1874
    %v1892 = vunpack.c.l.b16 %v1875
    %v1893 = vunpack.c.h.b16 %v1875
    %v1894 = vunpack.c.l.b16 %v1876
    %v1895 = vunpack.c.h.b16 %v1876
    %v1896 = vunpack.c.l.b16 %v1877
    %v1897 = vunpack.c.h.b16 %v1877
    %v1898 = vunpack.c.l.b16 %v1878
    %v1899 = vunpack.c.h.b16 %v1878
    %v1900 = vunpack.c.l.b16 %v1879
    %v1901 = vunpack.c.h.b16 %v1879
    %v1902 = vunpack.c.l.b16 %v1880
    %v1903 = vunpack.c.h.b16 %v1880
    %v1904 = vunpack.c.l.b16 %v1881
    %v1905 = vunpack.c.h.b16 %v1881
    %v1906 = vpack.c.b16 %v1890, %v1890
    %v1907 = vpack.c.b16 %v1891, %v1891
    %v1908 = vpack.c.b16 %v1892, %v1892
    %v1909 = vpack.c.b16 %v1893, %v1893
    %v1910 = vpack.c.b16 %v1894, %v1894
    %v1911 = vpack.c.b16 %v1895, %v1895
    %v1912 = vpack.c.b16 %v1896, %v1896
    %v1913 = vpack.c.b16 %v1897, %v1897
    %v1914 = vpack.c.b16 %v1898, %v1898
    %v1915 = vpack.c.b16 %v1899, %v1899
    %v1916 = vpack.c.b16 %v1900, %v1900
    %v1917 = vpack.c.b16 %v1901, %v1901
    %v1918 = vpack.c.b16 %v1902, %v1902
    %v1919 = vpack.c.b16 %v1903, %v1903
    %v1920 = vpack.c.b16 %v1904, %v1904
    %v1921 = vpack.c.b16 %v1905, %v1905
    %1938 = vst [vmem:[#allocation10] sm:$0xf] %v1906
    %1939 = vst [vmem:[#allocation10 + $0x4] sm:$0xf] %v1907
    %1940 = vst [vmem:[#allocation10 + $0x8] sm:$0xf] %v1908
    %1941 = vst [vmem:[#allocation10 + $0xc] sm:$0xf] %v1909
    %1942 = vst [vmem:[#allocation10 + $0x10] sm:$0xf] %v1910
    %1943 = vst [vmem:[#allocation10 + $0x14] sm:$0xf] %v1911
    %1944 = vst [vmem:[#allocation10 + $0x18] sm:$0xf] %v1912
    %1945 = vst [vmem:[#allocation10 + $0x1c] sm:$0xf] %v1913
    %1946 = vst [vmem:[#allocation10 + $0x20] sm:$0xf] %v1914
    %1947 = vst [vmem:[#allocation10 + $0x24] sm:$0xf] %v1915
    %1948 = vst [vmem:[#allocation10 + $0x28] sm:$0xf] %v1916
    %1949 = vst [vmem:[#allocation10 + $0x2c] sm:$0xf] %v1917
    %1950 = vst [vmem:[#allocation10 + $0x30] sm:$0xf] %v1918
    %1951 = vst [vmem:[#allocation10 + $0x34] sm:$0xf] %v1919
    %1952 = vst [vmem:[#allocation10 + $0x38] sm:$0xf] %v1920
    %1953 = vst [vmem:[#allocation10 + $0x3c] sm:$0xf] %v1921
    // Predicated region
    $region46: #{tpu_custom_call.1} parent=1 // pred_check
      _
    $region47: #{tpu_custom_call.1} parent=1 // pred_check_branch
      %1955 = sbr.rel (0) target = $region49
    $region48: #{tpu_custom_call.1} parent=1 // pred_region
      %s1957 = ssub.s32 1024, 1024
      %1958 = vsyncadd [#allocation4], %s1957
      %s1959 = sshll.u32 [#allocation10], 4
      %s1960 = int_to_ptr.vmem [resolvable:$true] %s1959
      %1965 = dma.vmem_to_hbm [thread:$0]  %s1960, 1024, %s7, [#allocation4], 64, 64, 4
    $region49: #{tpu_custom_call.1} parent=1 // pred_fallthru
      _
    // Predicated region
    $region50: #{tpu_custom_call.1} parent=1 // pred_check
      _
    $region51: #{tpu_custom_call.1} parent=1 // pred_check_branch
      %1967 = sbr.rel (0) target = $region53
    $region52: #{tpu_custom_call.1} parent=1 // pred_region
      %1968 = dma.done [#allocation4], 1024
    $region53: #{tpu_custom_call.1} parent=1 // pred_fallthru
      _
    %1969 = vsyncpa [#allocation3], 1
    %1970 = vsyncpa [#allocation6], 1
    %1971 = vsyncpa [#allocation9], 1
    %1972 = vsyncpa [#allocation4], 1

</llo_original>
